<compile_context>
chip_gen: v7x
topology: tpu7x:2x2x1
jax: 0.10.0
libtpu: 0.0.40
codegen_flags: <defaults>
</compile_context>

<pallas_src>
import jax
import jax.numpy as jnp
from jax import lax
from jax.experimental import pallas as pl
from jax.experimental.pallas import tpu as pltpu


def _round_up(x, n):
    return ((x + n - 1) // n) * n


def _pick_bb(b, t, dim, s, m, out_w, df_w):
    """Batch-block size: biggest BB whose per-step live set stays under ~8 MiB
    (safe vs. the 16 MiB v5e scoped-VMEM default and v7x's 64 MiB physical),
    while keeping >=2 grid steps when possible so ("parallel",) can shard the
    grid across v7x's two TensorCores."""
    per_ex = 4 * (12 * t * t
                  + 2 * t * (dim + out_w + df_w)
                  + 6 * t * max(s, 3 * m, out_w))
    budget = 8 * 1024 * 1024
    bb = max(1, min(b, budget // max(per_ex, 1)))
    while bb > 1 and ((b % bb) != 0 or (b // bb) < 2):
        bb -= 1
    if b % bb != 0:
        bb = 1
    return bb


# ----------------------------------------------------------------------------
# Fused kernel: one (BB, T, ...) batch block per grid step, all in VMEM.
# ----------------------------------------------------------------------------
def _make_kernel(sem_dim, str_dim, bidirectional):
    m, s = sem_dim, str_dim
    f32 = jnp.float32

    def kernel(x_ref, wstr_ref, wfz_ref, vec_ref, out_ref, df_ref,
               lmat_ref, rmat_ref):
        bb, t, dim = x_ref.shape
        out_w = out_ref.shape[-1]
        df_w = df_ref.shape[-1]

        # ---- in-kernel sem/str split (static lane slices, no extra HBM pass)
        x_v = x_ref[...]
        if bidirectional:
            half, h = dim // 2, m // 2
            sem_v = jnp.concatenate(
                [x_v[:, :, 0:h], x_v[:, :, half:half + h]], axis=-1)
            str_v = jnp.concatenate(
                [x_v[:, :, h:half], x_v[:, :, half + h:dim]], axis=-1)
        else:
            sem_v = x_v[:, :, 0:m]
            str_v = x_v[:, :, m:dim]

        # ---- sublane-packed constants (aligned prefix Ref views) ----
        w_p = wstr_ref[0:s, :]              # (S,S)  tp_linear.weight.T
        w_c = wstr_ref[s:2 * s, :]          # (S,S)  tc_linear.weight.T
        w_bil = wstr_ref[2 * s:3 * s, :]    # (S,S)  bilinear.weight[0]
        b_p = vec_ref[0:1, 0:s]
        b_c = vec_ref[1:2, 0:s]
        b_fz = vec_ref[2:3, 0:out_w]
        exparam = vec_ref[3:4, 0:m]
        w_fi = vec_ref[4:5, 0:s]            # (1,S)  fi_linear.weight

        # iota / identity helpers
        eye2 = (lax.broadcasted_iota(jnp.int32, (t, t), 0)
                == lax.broadcasted_iota(jnp.int32, (t, t), 1)).astype(f32)
        rowid3 = lax.broadcasted_iota(jnp.int32, (1, t, t), 1)
        colid3 = lax.broadcasted_iota(jnp.int32, (1, t, t), 2)
        rowid_col = lax.broadcasted_iota(jnp.int32, (1, t, 1), 1)

        dn_w = (((2,), (0,)), ((), ()))        # (BB,T,K) x (K,N)   -> (BB,T,N)
        dn_bil = (((2,), (2,)), ((0,), (0,)))  # (BB,P,S) x (BB,Q,S) -> (BB,P,Q)

        # ---- STEP 1: attention matrix ------------------------------------
        tp = jnp.tanh(lax.dot_general(str_v, w_p, dn_w,
                                      preferred_element_type=f32) + b_p)
        tc = jnp.tanh(lax.dot_general(str_v, w_c, dn_w,
                                      preferred_element_type=f32) + b_c)
        tpw = lax.dot_general(tp, w_bil, dn_w, preferred_element_type=f32)
        f_ij = lax.dot_general(tpw, tc, dn_bil,
                               preferred_element_type=f32)            # (BB,T,T)

        a_ij = jnp.exp(f_ij) * (1.0 - eye2)                           # (BB,T,T)
        # a_ji = a_ij^T via an MXU identity-transpose: no duplicated T^2 exp
        # on the single-unit EUP and no second (T,T,S) bilinear matmul.
        a_ji = lax.dot_general(a_ij, eye2, (((1,), (0,)), ((), ())),
                               preferred_element_type=f32)            # (BB,T,T)

        # root scores f_i in both orientations (both are T-sized, cheap)
        fi_col = jnp.exp(lax.dot_general(str_v, w_fi, (((2,), (1,)), ((), ())),
                                         preferred_element_type=f32))  # (BB,T,1)
        w_fi_b = jnp.broadcast_to(w_fi, (bb, 1, s))
        fi_row = jnp.exp(lax.dot_general(w_fi_b, str_v, dn_bil,
                                         preferred_element_type=f32))  # (BB,1,T)

        col_sum = jnp.sum(a_ij, axis=1, keepdims=True)                 # (BB,1,T)
        l_ij = eye2 * col_sum - a_ij
        l_bar = jnp.where(rowid3 == 0, fi_row, l_ij)

        # ---- STEP 2: in-kernel Gauss-Jordan inverse, [L | I] in VMEM scratch
        # TODO(synk): diagonal pivots only (no row pivoting); adequate for this
        # exp-weighted Laplacian, not a drop-in general-purpose inverse.
        lmat_ref[...] = l_bar
        rmat_ref[...] = jnp.broadcast_to(eye2, (bb, t, t))

        def gj_step(k):
            static = isinstance(k, int)
            row_l = lmat_ref[:, pl.ds(k, 1), :]                        # (BB,1,T)
            row_r = rmat_ref[:, pl.ds(k, 1), :]                        # (BB,1,T)
            if static:
                pivot = row_l[:, :, k:k + 1]                           # (BB,1,1)
            else:
                lane_row = lax.broadcasted_iota(jnp.int32, (1, 1, t), 2)
                pivot = jnp.sum(jnp.where(lane_row == k, row_l, 0.0),
                                axis=2, keepdims=True)
            pivot = jnp.where(pivot == 0.0, 1e-30, pivot)   # exact-zero guard
            inv_p = 1.0 / pivot                             # one divide / step
            nrow_l = row_l * inv_p
            nrow_r = row_r * inv_p
            lm = lmat_ref[...]
            rm = rmat_ref[...]
            if static:
                col_k = lm[:, :, k:k + 1]                              # (BB,T,1)
            else:
                col_k = jnp.sum(jnp.where(colid3 == k, lm, 0.0),
                                axis=2, keepdims=True)
            factors = jnp.where(rowid_col == k, 0.0, col_k)
            lmat_ref[...] = lm - factors * nrow_l
            rmat_ref[...] = rm - factors * nrow_r
            lmat_ref[:, pl.ds(k, 1), :] = nrow_l
            rmat_ref[:, pl.ds(k, 1), :] = nrow_r

        if t <= 16:
            # static indices -> static slices, full unroll (small T only)
            for k in range(t):
                gj_step(k)
        else:
            # partial unroll keeps vreg pressure bounded at larger T
            def body(k, carry):
                gj_step(k)
                return carry
            lax.fori_loop(0, t, body, 0, unroll=8)

        llinv = rmat_ref[...]                                          # (BB,T,T)

        # ---- STEP 3: matrix-tree marginals, directly in transposed layout -
        diag_col = jnp.sum(llinv * eye2, axis=2, keepdims=True)        # (BB,T,1)
        d0 = fi_col * llinv[:, :, 0:1]                                 # (BB,T,1)
        dx_t = (jnp.where(rowid3 == 0, 0.0, a_ji * diag_col)
                - jnp.where(colid3 == 0, 0.0, a_ji * llinv))           # = dx^T

        # ---- STEP 4: pinp / cinp + fused fzlinear + ReLU, lane-dense stores
        pinp = d0 * exparam + lax.dot_general(
            dx_t, sem_v, (((2,), (1,)), ((0,), (0,))),
            preferred_element_type=f32)                                # (BB,T,M)
        cinp = lax.dot_general(
            dx_t, sem_v, (((1,), (1,)), ((0,), (0,))),
            preferred_element_type=f32)                                # (BB,T,M)
        finp = jnp.concatenate([sem_v, pinp, cinp], axis=-1)           # (BB,T,3M)
        pre = lax.dot_general(finp, wfz_ref[...], dn_w,
                              preferred_element_type=f32) + b_fz       # (BB,T,out_w)
        out_ref[...] = jnp.maximum(pre, 0.0)

        # df = [d0 | dx^T | 0] assembled in-vreg, one full-width (lane-dense)
        # store; wrapper slices back to (.., T+1).
        pieces = [d0, dx_t]
        if df_w > t + 1:
            pieces.append(jnp.zeros((bb, t, df_w - t - 1), f32))
        df_ref[...] = jnp.concatenate(pieces, axis=-1)

    return kernel


# ----------------------------------------------------------------------------
# Wrapper
# ----------------------------------------------------------------------------
def struct_induction_forward(x, params, sem_dim, bidirectional):
    b, t, dim = x.shape
    m = sem_dim
    s = dim - sem_dim
    f32 = jnp.float32

    out_w = _round_up(2 * m, 128)        # lane-dense fz output (sliced below)
    df_w = _round_up(t + 1, 128)         # lane-dense df output (sliced below)
    vec_w = max(s, m, out_w)
    bb = _pick_bb(b, t, dim, s, m, out_w, df_w)

    # sublane-stacked structural weights: [wp^T ; wc^T ; wbil[0]] -> (3S, S)
    w_struct = jnp.concatenate(
        [params["wp"].T, params["wc"].T, params["wbil"][0]], axis=0).astype(f32)
    # fz weight transposed and column-padded to a lane-dense (3M, out_w)
    wfz_pad = jnp.zeros((3 * m, out_w), f32).at[:, :2 * m].set(params["wfz"].T)

    def _row(v):
        v = jnp.asarray(v, f32).reshape(-1)
        return jnp.zeros((vec_w,), f32).at[:v.shape[0]].set(v)

    # one constant per sublane row (8, vec_w): all kernel slices are views
    vec = jnp.stack(
        [_row(params["bp"]), _row(params["bc"]), _row(params["bfz"]),
         _row(params["exparam"]), _row(params["wfi"]),
         jnp.zeros((vec_w,), f32), jnp.zeros((vec_w,), f32),
         jnp.zeros((vec_w,), f32)], axis=0)

    kernel = _make_kernel(m, s, bidirectional)

    out_p, df_p = pl.pallas_call(
        kernel,
        out_shape=(
            jax.ShapeDtypeStruct((b, t, out_w), f32),
            jax.ShapeDtypeStruct((b, t, df_w), f32),
        ),
        grid=(b // bb,),
        in_specs=[
            pl.BlockSpec((bb, t, dim), lambda i: (i, 0, 0)),
            pl.BlockSpec((3 * s, s), lambda i: (0, 0)),
            pl.BlockSpec((3 * m, out_w), lambda i: (0, 0)),
            pl.BlockSpec((8, vec_w), lambda i: (0, 0)),
        ],
        out_specs=(
            pl.BlockSpec((bb, t, out_w), lambda i: (i, 0, 0)),
            pl.BlockSpec((bb, t, df_w), lambda i: (i, 0, 0)),
        ),
        scratch_shapes=[
            pltpu.VMEM((bb, t, t), f32),   # L (Gauss-Jordan left block)
            pltpu.VMEM((bb, t, t), f32),   # I -> L^-1 (right block)
        ],
        compiler_params=pltpu.CompilerParams(
            dimension_semantics=("parallel",)),
    )(x.astype(f32), w_struct, wfz_pad, vec)

    return out_p[:, :, :2 * m], df_p[:, :, :t + 1]


# ----------------------------------------------------------------------------
# Deterministic parameter init (mirrors the module's __init__ shapes)
# ----------------------------------------------------------------------------
def init_params(key, sem_dim, hidden):
    str_dim = hidden - sem_dim
    ks = jax.random.split(key, 6)

    def xavier(k, shape, fan_in, fan_out):
        bound = (6.0 / (fan_in + fan_out)) ** 0.5
        return jax.random.uniform(k, shape, jnp.float32, -bound, bound)

    return {
        "wp": xavier(ks[0], (str_dim, str_dim), str_dim, str_dim),
        "bp": jnp.zeros((str_dim,), jnp.float32),
        "wc": xavier(ks[1], (str_dim, str_dim), str_dim, str_dim),
        "bc": jnp.zeros((str_dim,), jnp.float32),
        "wfi": xavier(ks[2], (1, str_dim), str_dim, 1),
        "wbil": xavier(ks[3], (1, str_dim, str_dim), str_dim * str_dim, str_dim),
        "exparam": xavier(ks[4], (1, 1, sem_dim), sem_dim, sem_dim),
        "wfz": xavier(ks[5], (2 * sem_dim, 3 * sem_dim), 3 * sem_dim, 2 * sem_dim),
        "bfz": jnp.zeros((2 * sem_dim,), jnp.float32),
    }


# ----------------------------------------------------------------------------
# Pure-JAX reference (mirrors the PyTorch forward exactly)
# ----------------------------------------------------------------------------
def reference_forward(x, p, sem_dim, bidirectional):
    b, t, dim = x.shape
    if bidirectional:
        xv = x.reshape(b, t, 2, dim // 2)
        h = sem_dim // 2
        sem_v = jnp.concatenate([xv[:, :, 0, :h], xv[:, :, 1, :h]], axis=2)
        str_v = jnp.concatenate([xv[:, :, 0, h:], xv[:, :, 1, h:]], axis=2)
    else:
        sem_v = x[:, :, :sem_dim]
        str_v = x[:, :, sem_dim:]
    tp = jnp.tanh(str_v @ p["wp"].T + p["bp"])
    tc = jnp.tanh(str_v @ p["wc"].T + p["bc"])
    f_ij = jnp.einsum("bis,st,bjt->bij", tp, p["wbil"][0], tc,
                      precision=jax.lax.Precision.HIGHEST)
    f_i = jnp.exp(str_v @ p["wfi"].T)[..., 0]
    eye = jnp.eye(t, dtype=jnp.float32)
    a_ij = jnp.exp(f_ij) * (1.0 - eye)[None]
    col_sum = jnp.sum(a_ij, axis=1)
    l_ij = -a_ij + eye[None] * col_sum[:, None, :]
    l_bar = l_ij.at[:, 0, :].set(f_i)
    inv = jnp.linalg.inv(l_bar)
    d0 = f_i * inv[:, :, 0]
    diag = jnp.diagonal(inv, axis1=-2, axis2=-1)[:, :, None]
    tmp1 = jnp.transpose(jnp.transpose(a_ij, (0, 2, 1)) * diag, (0, 2, 1))
    tmp2 = a_ij * jnp.transpose(inv, (0, 2, 1))
    mask1 = jnp.concatenate([jnp.zeros((b, t, 1)), jnp.ones((b, t, t - 1))], 2)
    mask2 = jnp.concatenate([jnp.zeros((b, 1, t)), jnp.ones((b, t - 1, t))], 1)
    dx = mask1 * tmp1 - mask2 * tmp2
    d = jnp.concatenate([d0[:, None, :], dx], axis=1)
    df = jnp.transpose(d, (0, 2, 1))
    ssr = jnp.concatenate([jnp.tile(p["exparam"], (b, 1, 1)), sem_v], axis=1)
    pinp = jnp.einsum("bij,bjm->bim", df, ssr,
                      precision=jax.lax.Precision.HIGHEST)
    cinp = jnp.einsum("bij,bjm->bim", dx, sem_v,
                      precision=jax.lax.Precision.HIGHEST)
    finp = jnp.concatenate([sem_v, pinp, cinp], axis=2)
    out = jax.nn.relu(
        jnp.einsum("bim,om->bio", finp, p["wfz"],
                   precision=jax.lax.Precision.HIGHEST) + p["bfz"])
    return out, df


if __name__ == "__main__":
    B, T = 2, 8
    sem_dim, hidden = 16, 32          # str_dim = 16
    bidirectional = True

    key = jax.random.PRNGKey(0)
    kx, kp = jax.random.split(key)
    x = jax.random.normal(kx, (B, T, hidden), dtype=jnp.float32)
    params = init_params(kp, sem_dim, hidden)

    out, df = struct_induction_forward(x, params, sem_dim, bidirectional)
    out, df = jax.block_until_ready((out, df))

    ref_out, ref_df = reference_forward(x, params, sem_dim, bidirectional)
    assert out.shape == (B, T, 2 * sem_dim) and df.shape == (B, T, T + 1)
    assert jnp.allclose(out, ref_out, rtol=5e-2, atol=5e-2), \
        float(jnp.max(jnp.abs(out - ref_out)))
    assert jnp.allclose(df, ref_df, rtol=5e-2, atol=5e-2), \
        float(jnp.max(jnp.abs(df - ref_df)))

    print("KERNEL_OK")
</pallas_src>

<mosaic_0001>
module attributes {stable_mosaic.version = 11 : i64} {
  func.func @kernel(%arg0: i32, %arg1: memref<1x8x32xf32, #tpu.memory_space<vmem>>, %arg2: memref<48x16xf32, #tpu.memory_space<vmem>>, %arg3: memref<48x128xf32, #tpu.memory_space<vmem>>, %arg4: memref<8x128xf32, #tpu.memory_space<vmem>>, %arg5: memref<1x8x128xf32, #tpu.memory_space<vmem>>, %arg6: memref<1x8x128xf32, #tpu.memory_space<vmem>>, %arg7: memref<1x8x8xf32, #tpu.memory_space<vmem>>, %arg8: memref<1x8x8xf32, #tpu.memory_space<vmem>>) attributes {dimension_semantics = [#tpu.dimension_semantics<parallel>], iteration_bounds = array<i64: 2>, scalar_prefetch = 0 : i64, scratch_operands = 2 : i64, tpu.core_type = #tpu.core_type<tc>, window_params = [{transform_indices = @transform_0, window_bounds = array<i64: 1, 8, 32>}, {pipeline_mode = #tpu.pipeline_mode<synchronous>, transform_indices = @transform_1, window_bounds = array<i64: 48, 16>}, {pipeline_mode = #tpu.pipeline_mode<synchronous>, transform_indices = @transform_2, window_bounds = array<i64: 48, 128>}, {pipeline_mode = #tpu.pipeline_mode<synchronous>, transform_indices = @transform_3, window_bounds = array<i64: 8, 128>}, {transform_indices = @transform_4, window_bounds = array<i64: 1, 8, 128>}, {transform_indices = @transform_5, window_bounds = array<i64: 1, 8, 128>}]} {
    %c0 = arith.constant 0 : index
    %c0_0 = arith.constant 0 : index
    %c0_1 = arith.constant 0 : index
    %0 = vector.load %arg1[%c0, %c0_0, %c0_1] : memref<1x8x32xf32, #tpu.memory_space<vmem>>, vector<1x8x32xf32>
    %1 = vector.extract_strided_slice %0 {offsets = [0, 0, 0], sizes = [1, 8, 8], strides = [1, 1, 1]} : vector<1x8x32xf32> to vector<1x8x8xf32>
    %2 = vector.extract_strided_slice %0 {offsets = [0, 0, 16], sizes = [1, 8, 8], strides = [1, 1, 1]} : vector<1x8x32xf32> to vector<1x8x8xf32>
    %3 = tpu.concatenate %1, %2 in 2 : vector<1x8x8xf32>, vector<1x8x8xf32> -> vector<1x8x16xf32>
    %4 = vector.extract_strided_slice %0 {offsets = [0, 0, 8], sizes = [1, 8, 8], strides = [1, 1, 1]} : vector<1x8x32xf32> to vector<1x8x8xf32>
    %5 = vector.extract_strided_slice %0 {offsets = [0, 0, 24], sizes = [1, 8, 8], strides = [1, 1, 1]} : vector<1x8x32xf32> to vector<1x8x8xf32>
    %6 = tpu.concatenate %4, %5 in 2 : vector<1x8x8xf32>, vector<1x8x8xf32> -> vector<1x8x16xf32>
    %c0_2 = arith.constant 0 : index
    %c0_3 = arith.constant 0 : index
    %7 = vector.load %arg2[%c0_2, %c0_3] : memref<48x16xf32, #tpu.memory_space<vmem>>, vector<16x16xf32>
    %c16 = arith.constant 16 : index
    %c0_4 = arith.constant 0 : index
    %8 = vector.load %arg2[%c16, %c0_4] : memref<48x16xf32, #tpu.memory_space<vmem>>, vector<16x16xf32>
    %c32 = arith.constant 32 : index
    %c0_5 = arith.constant 0 : index
    %9 = vector.load %arg2[%c32, %c0_5] : memref<48x16xf32, #tpu.memory_space<vmem>>, vector<16x16xf32>
    %c0_6 = arith.constant 0 : index
    %c0_7 = arith.constant 0 : index
    %10 = vector.load %arg4[%c0_6, %c0_7] : memref<8x128xf32, #tpu.memory_space<vmem>>, vector<1x16xf32>
    %c1 = arith.constant 1 : index
    %c0_8 = arith.constant 0 : index
    %11 = vector.load %arg4[%c1, %c0_8] : memref<8x128xf32, #tpu.memory_space<vmem>>, vector<1x16xf32>
    %c2 = arith.constant 2 : index
    %c0_9 = arith.constant 0 : index
    %12 = vector.load %arg4[%c2, %c0_9] : memref<8x128xf32, #tpu.memory_space<vmem>>, vector<1x128xf32>
    %c3 = arith.constant 3 : index
    %c0_10 = arith.constant 0 : index
    %13 = vector.load %arg4[%c3, %c0_10] : memref<8x128xf32, #tpu.memory_space<vmem>>, vector<1x16xf32>
    %c4 = arith.constant 4 : index
    %c0_11 = arith.constant 0 : index
    %14 = vector.load %arg4[%c4, %c0_11] : memref<8x128xf32, #tpu.memory_space<vmem>>, vector<1x16xf32>
    %15 = tpu.iota {dimensions = array<i32: 0>} : vector<8x8xi32>
    %16 = tpu.iota {dimensions = array<i32: 1>} : vector<8x8xi32>
    %17 = arith.cmpi eq, %15, %16 : vector<8x8xi32>
    %18 = arith.extui %17 : vector<8x8xi1> to vector<8x8xi32>
    %19 = arith.sitofp %18 : vector<8x8xi32> to vector<8x8xf32>
    %20 = tpu.iota {dimensions = array<i32: 1>} : vector<1x8x8xi32>
    %21 = tpu.iota {dimensions = array<i32: 2>} : vector<1x8x8xi32>
    %22 = tpu.iota {dimensions = array<i32: 1>} : vector<1x8x1xi32>
    %cst = arith.constant dense<0.000000e+00> : vector<1x8x16xf32>
    %23 = tpu.matmul %6, %7, %cst {dimension_numbers = #tpu.dot_dimension_numbers<[2], [0], [0, 1], [1], [0, 0, 0, 1, 1, 1], [], []>} : vector<1x8x16xf32>, vector<16x16xf32>, vector<1x8x16xf32> -> vector<1x8x16xf32>
    %24 = vector.shape_cast %10 : vector<1x16xf32> to vector<1x1x16xf32>
    %25 = vector.broadcast %24 : vector<1x1x16xf32> to vector<1x8x16xf32>
    %26 = arith.addf %23, %25 : vector<1x8x16xf32>
    %27 = math.tanh %26 : vector<1x8x16xf32>
    %cst_12 = arith.constant dense<0.000000e+00> : vector<1x8x16xf32>
    %28 = tpu.matmul %6, %8, %cst_12 {dimension_numbers = #tpu.dot_dimension_numbers<[2], [0], [0, 1], [1], [0, 0, 0, 1, 1, 1], [], []>} : vector<1x8x16xf32>, vector<16x16xf32>, vector<1x8x16xf32> -> vector<1x8x16xf32>
    %29 = vector.shape_cast %11 : vector<1x16xf32> to vector<1x1x16xf32>
    %30 = vector.broadcast %29 : vector<1x1x16xf32> to vector<1x8x16xf32>
    %31 = arith.addf %28, %30 : vector<1x8x16xf32>
    %32 = math.tanh %31 : vector<1x8x16xf32>
    %cst_13 = arith.constant dense<0.000000e+00> : vector<1x8x16xf32>
    %33 = tpu.matmul %27, %9, %cst_13 {dimension_numbers = #tpu.dot_dimension_numbers<[2], [0], [0, 1], [1], [0, 0, 0, 1, 1, 1], [], []>} : vector<1x8x16xf32>, vector<16x16xf32>, vector<1x8x16xf32> -> vector<1x8x16xf32>
    %cst_14 = arith.constant dense<0.000000e+00> : vector<1x8x8xf32>
    %34 = tpu.matmul %33, %32, %cst_14 {dimension_numbers = #tpu.dot_dimension_numbers<[2], [2], [1], [1], [0, 0, 0, 1, 1, 1], [0], [0]>} : vector<1x8x16xf32>, vector<1x8x16xf32>, vector<1x8x8xf32> -> vector<1x8x8xf32>
    %35 = math.exp %34 : vector<1x8x8xf32>
    %cst_15 = arith.constant 1.000000e+00 : f32
    %36 = vector.broadcast %cst_15 : f32 to vector<8x8xf32>
    %37 = arith.subf %36, %19 : vector<8x8xf32>
    %38 = vector.shape_cast %37 : vector<8x8xf32> to vector<1x8x8xf32>
    %39 = arith.mulf %35, %38 : vector<1x8x8xf32>
    %cst_16 = arith.constant dense<0.000000e+00> : vector<1x8x8xf32>
    %40 = tpu.matmul %39, %19, %cst_16 {dimension_numbers = #tpu.dot_dimension_numbers<[1], [0], [0, 2], [1], [0, 0, 0, 2, 1, 1], [], []>} : vector<1x8x8xf32>, vector<8x8xf32>, vector<1x8x8xf32> -> vector<1x8x8xf32>
    %cst_17 = arith.constant dense<0.000000e+00> : vector<1x8x1xf32>
    %41 = tpu.matmul %6, %14, %cst_17 {dimension_numbers = #tpu.dot_dimension_numbers<[2], [1], [0, 1], [0], [0, 0, 0, 1, 1, 0], [], []>} : vector<1x8x16xf32>, vector<1x16xf32>, vector<1x8x1xf32> -> vector<1x8x1xf32>
    %42 = math.exp %41 : vector<1x8x1xf32>
    %43 = vector.shape_cast %14 : vector<1x16xf32> to vector<1x1x16xf32>
    %cst_18 = arith.constant dense<0.000000e+00> : vector<1x1x8xf32>
    %44 = tpu.matmul %43, %6, %cst_18 {dimension_numbers = #tpu.dot_dimension_numbers<[2], [2], [1], [1], [0, 0, 0, 1, 1, 1], [0], [0]>} : vector<1x1x16xf32>, vector<1x8x16xf32>, vector<1x1x8xf32> -> vector<1x1x8xf32>
    %45 = math.exp %44 : vector<1x1x8xf32>
    %cst_19 = arith.constant dense<0.000000e+00> : vector<1x8xf32>
    %46 = vector.multi_reduction <add>, %39, %cst_19 [1] : vector<1x8x8xf32> to vector<1x8xf32>
    %47 = vector.shape_cast %46 : vector<1x8xf32> to vector<1x1x8xf32>
    %48 = vector.shape_cast %19 : vector<8x8xf32> to vector<1x8x8xf32>
    %49 = vector.broadcast %47 : vector<1x1x8xf32> to vector<1x8x8xf32>
    %50 = arith.mulf %48, %49 : vector<1x8x8xf32>
    %51 = arith.subf %50, %39 : vector<1x8x8xf32>
    %c0_i32 = arith.constant 0 : i32
    %52 = vector.broadcast %c0_i32 : i32 to vector<1x8x8xi32>
    %53 = arith.cmpi eq, %20, %52 : vector<1x8x8xi32>
    %54 = vector.shape_cast %45 : vector<1x1x8xf32> to vector<1x1x8xf32>
    %55 = vector.broadcast %54 : vector<1x1x8xf32> to vector<1x8x8xf32>
    %56 = arith.select %53, %55, %51 : vector<1x8x8xi1>, vector<1x8x8xf32>
    %c0_20 = arith.constant 0 : index
    %c0_21 = arith.constant 0 : index
    %c0_22 = arith.constant 0 : index
    %57 = vector.load %arg7[%c0_20, %c0_21, %c0_22] : memref<1x8x8xf32, #tpu.memory_space<vmem>>, vector<1x8x8xf32>
    tpu.vector_store %arg7[%c0_20, %c0_21, %c0_22], %56 {strides = array<i32>} : memref<1x8x8xf32, #tpu.memory_space<vmem>>, vector<1x8x8xf32>,
    %58 = vector.shape_cast %19 : vector<8x8xf32> to vector<1x8x8xf32>
    %c0_23 = arith.constant 0 : index
    %c0_24 = arith.constant 0 : index
    %c0_25 = arith.constant 0 : index
    %59 = vector.load %arg8[%c0_23, %c0_24, %c0_25] : memref<1x8x8xf32, #tpu.memory_space<vmem>>, vector<1x8x8xf32>
    tpu.vector_store %arg8[%c0_23, %c0_24, %c0_25], %58 {strides = array<i32>} : memref<1x8x8xf32, #tpu.memory_space<vmem>>, vector<1x8x8xf32>,
    %c0_26 = arith.constant 0 : index
    %c0_27 = arith.constant 0 : index
    %c0_28 = arith.constant 0 : index
    %60 = vector.load %arg7[%c0_26, %c0_27, %c0_28] : memref<1x8x8xf32, #tpu.memory_space<vmem>>, vector<1x1x8xf32>
    %c0_29 = arith.constant 0 : index
    %c0_30 = arith.constant 0 : index
    %c0_31 = arith.constant 0 : index
    %61 = vector.load %arg8[%c0_29, %c0_30, %c0_31] : memref<1x8x8xf32, #tpu.memory_space<vmem>>, vector<1x1x8xf32>
    %62 = vector.extract_strided_slice %60 {offsets = [0, 0, 0], sizes = [1, 1, 1], strides = [1, 1, 1]} : vector<1x1x8xf32> to vector<1x1x1xf32>
    %cst_32 = arith.constant 0.000000e+00 : f32
    %63 = vector.broadcast %cst_32 : f32 to vector<1x1x1xf32>
    %64 = arith.cmpf oeq, %62, %63 : vector<1x1x1xf32>
    %cst_33 = arith.constant 1.000000e-30 : f32
    %65 = vector.broadcast %cst_33 : f32 to vector<1x1x1xf32>
    %66 = arith.select %64, %65, %62 : vector<1x1x1xi1>, vector<1x1x1xf32>
    %cst_34 = arith.constant 1.000000e+00 : f32
    %67 = vector.broadcast %cst_34 : f32 to vector<1x1x1xf32>
    %68 = arith.divf %67, %66 : vector<1x1x1xf32>
    %69 = vector.broadcast %68 : vector<1x1x1xf32> to vector<1x1x8xf32>
    %70 = arith.mulf %60, %69 : vector<1x1x8xf32>
    %71 = vector.broadcast %68 : vector<1x1x1xf32> to vector<1x1x8xf32>
    %72 = arith.mulf %61, %71 : vector<1x1x8xf32>
    %c0_35 = arith.constant 0 : index
    %c0_36 = arith.constant 0 : index
    %c0_37 = arith.constant 0 : index
    %73 = vector.load %arg7[%c0_35, %c0_36, %c0_37] : memref<1x8x8xf32, #tpu.memory_space<vmem>>, vector<1x8x8xf32>
    %c0_38 = arith.constant 0 : index
    %c0_39 = arith.constant 0 : index
    %c0_40 = arith.constant 0 : index
    %74 = vector.load %arg8[%c0_38, %c0_39, %c0_40] : memref<1x8x8xf32, #tpu.memory_space<vmem>>, vector<1x8x8xf32>
    %75 = vector.extract_strided_slice %73 {offsets = [0, 0, 0], sizes = [1, 8, 1], strides = [1, 1, 1]} : vector<1x8x8xf32> to vector<1x8x1xf32>
    %c0_i32_41 = arith.constant 0 : i32
    %76 = vector.broadcast %c0_i32_41 : i32 to vector<1x8x1xi32>
    %77 = arith.cmpi eq, %22, %76 : vector<1x8x1xi32>
    %cst_42 = arith.constant 0.000000e+00 : f32
    %78 = vector.broadcast %cst_42 : f32 to vector<1x8x1xf32>
    %79 = arith.select %77, %78, %75 : vector<1x8x1xi1>, vector<1x8x1xf32>
    %80 = vector.broadcast %79 : vector<1x8x1xf32> to vector<1x8x8xf32>
    %81 = vector.broadcast %70 : vector<1x1x8xf32> to vector<1x8x8xf32>
    %82 = arith.mulf %80, %81 : vector<1x8x8xf32>
    %83 = arith.subf %73, %82 : vector<1x8x8xf32>
    %c0_43 = arith.constant 0 : index
    %c0_44 = arith.constant 0 : index
    %c0_45 = arith.constant 0 : index
    %84 = vector.load %arg7[%c0_43, %c0_44, %c0_45] : memref<1x8x8xf32, #tpu.memory_space<vmem>>, vector<1x8x8xf32>
    tpu.vector_store %arg7[%c0_43, %c0_44, %c0_45], %83 {strides = array<i32>} : memref<1x8x8xf32, #tpu.memory_space<vmem>>, vector<1x8x8xf32>,
    %85 = vector.broadcast %79 : vector<1x8x1xf32> to vector<1x8x8xf32>
    %86 = vector.broadcast %72 : vector<1x1x8xf32> to vector<1x8x8xf32>
    %87 = arith.mulf %85, %86 : vector<1x8x8xf32>
    %88 = arith.subf %74, %87 : vector<1x8x8xf32>
    %c0_46 = arith.constant 0 : index
    %c0_47 = arith.constant 0 : index
    %c0_48 = arith.constant 0 : index
    %89 = vector.load %arg8[%c0_46, %c0_47, %c0_48] : memref<1x8x8xf32, #tpu.memory_space<vmem>>, vector<1x8x8xf32>
    tpu.vector_store %arg8[%c0_46, %c0_47, %c0_48], %88 {strides = array<i32>} : memref<1x8x8xf32, #tpu.memory_space<vmem>>, vector<1x8x8xf32>,
    %c0_49 = arith.constant 0 : index
    %c0_50 = arith.constant 0 : index
    %c0_51 = arith.constant 0 : index
    %90 = vector.load %arg7[%c0_49, %c0_50, %c0_51] : memref<1x8x8xf32, #tpu.memory_space<vmem>>, vector<1x1x8xf32>
    tpu.vector_store %arg7[%c0_49, %c0_50, %c0_51], %70 {strides = array<i32>} : memref<1x8x8xf32, #tpu.memory_space<vmem>>, vector<1x1x8xf32>,
    %c0_52 = arith.constant 0 : index
    %c0_53 = arith.constant 0 : index
    %c0_54 = arith.constant 0 : index
    %91 = vector.load %arg8[%c0_52, %c0_53, %c0_54] : memref<1x8x8xf32, #tpu.memory_space<vmem>>, vector<1x1x8xf32>
    tpu.vector_store %arg8[%c0_52, %c0_53, %c0_54], %72 {strides = array<i32>} : memref<1x8x8xf32, #tpu.memory_space<vmem>>, vector<1x1x8xf32>,
    %c0_55 = arith.constant 0 : index
    %c1_56 = arith.constant 1 : index
    %c0_57 = arith.constant 0 : index
    %92 = vector.load %arg7[%c0_55, %c1_56, %c0_57] : memref<1x8x8xf32, #tpu.memory_space<vmem>>, vector<1x1x8xf32>
    %c0_58 = arith.constant 0 : index
    %c1_59 = arith.constant 1 : index
    %c0_60 = arith.constant 0 : index
    %93 = vector.load %arg8[%c0_58, %c1_59, %c0_60] : memref<1x8x8xf32, #tpu.memory_space<vmem>>, vector<1x1x8xf32>
    %94 = vector.extract_strided_slice %92 {offsets = [0, 0, 1], sizes = [1, 1, 1], strides = [1, 1, 1]} : vector<1x1x8xf32> to vector<1x1x1xf32>
    %cst_61 = arith.constant 0.000000e+00 : f32
    %95 = vector.broadcast %cst_61 : f32 to vector<1x1x1xf32>
    %96 = arith.cmpf oeq, %94, %95 : vector<1x1x1xf32>
    %cst_62 = arith.constant 1.000000e-30 : f32
    %97 = vector.broadcast %cst_62 : f32 to vector<1x1x1xf32>
    %98 = arith.select %96, %97, %94 : vector<1x1x1xi1>, vector<1x1x1xf32>
    %cst_63 = arith.constant 1.000000e+00 : f32
    %99 = vector.broadcast %cst_63 : f32 to vector<1x1x1xf32>
    %100 = arith.divf %99, %98 : vector<1x1x1xf32>
    %101 = vector.broadcast %100 : vector<1x1x1xf32> to vector<1x1x8xf32>
    %102 = arith.mulf %92, %101 : vector<1x1x8xf32>
    %103 = vector.broadcast %100 : vector<1x1x1xf32> to vector<1x1x8xf32>
    %104 = arith.mulf %93, %103 : vector<1x1x8xf32>
    %c0_64 = arith.constant 0 : index
    %c0_65 = arith.constant 0 : index
    %c0_66 = arith.constant 0 : index
    %105 = vector.load %arg7[%c0_64, %c0_65, %c0_66] : memref<1x8x8xf32, #tpu.memory_space<vmem>>, vector<1x8x8xf32>
    %c0_67 = arith.constant 0 : index
    %c0_68 = arith.constant 0 : index
    %c0_69 = arith.constant 0 : index
    %106 = vector.load %arg8[%c0_67, %c0_68, %c0_69] : memref<1x8x8xf32, #tpu.memory_space<vmem>>, vector<1x8x8xf32>
    %107 = vector.extract_strided_slice %105 {offsets = [0, 0, 1], sizes = [1, 8, 1], strides = [1, 1, 1]} : vector<1x8x8xf32> to vector<1x8x1xf32>
    %c1_i32 = arith.constant 1 : i32
    %108 = vector.broadcast %c1_i32 : i32 to vector<1x8x1xi32>
    %109 = arith.cmpi eq, %22, %108 : vector<1x8x1xi32>
    %cst_70 = arith.constant 0.000000e+00 : f32
    %110 = vector.broadcast %cst_70 : f32 to vector<1x8x1xf32>
    %111 = arith.select %109, %110, %107 : vector<1x8x1xi1>, vector<1x8x1xf32>
    %112 = vector.broadcast %111 : vector<1x8x1xf32> to vector<1x8x8xf32>
    %113 = vector.broadcast %102 : vector<1x1x8xf32> to vector<1x8x8xf32>
    %114 = arith.mulf %112, %113 : vector<1x8x8xf32>
    %115 = arith.subf %105, %114 : vector<1x8x8xf32>
    %c0_71 = arith.constant 0 : index
    %c0_72 = arith.constant 0 : index
    %c0_73 = arith.constant 0 : index
    %116 = vector.load %arg7[%c0_71, %c0_72, %c0_73] : memref<1x8x8xf32, #tpu.memory_space<vmem>>, vector<1x8x8xf32>
    tpu.vector_store %arg7[%c0_71, %c0_72, %c0_73], %115 {strides = array<i32>} : memref<1x8x8xf32, #tpu.memory_space<vmem>>, vector<1x8x8xf32>,
    %117 = vector.broadcast %111 : vector<1x8x1xf32> to vector<1x8x8xf32>
    %118 = vector.broadcast %104 : vector<1x1x8xf32> to vector<1x8x8xf32>
    %119 = arith.mulf %117, %118 : vector<1x8x8xf32>
    %120 = arith.subf %106, %119 : vector<1x8x8xf32>
    %c0_74 = arith.constant 0 : index
    %c0_75 = arith.constant 0 : index
    %c0_76 = arith.constant 0 : index
    %121 = vector.load %arg8[%c0_74, %c0_75, %c0_76] : memref<1x8x8xf32, #tpu.memory_space<vmem>>, vector<1x8x8xf32>
    tpu.vector_store %arg8[%c0_74, %c0_75, %c0_76], %120 {strides = array<i32>} : memref<1x8x8xf32, #tpu.memory_space<vmem>>, vector<1x8x8xf32>,
    %c0_77 = arith.constant 0 : index
    %c1_78 = arith.constant 1 : index
    %c0_79 = arith.constant 0 : index
    %122 = vector.load %arg7[%c0_77, %c1_78, %c0_79] : memref<1x8x8xf32, #tpu.memory_space<vmem>>, vector<1x1x8xf32>
    tpu.vector_store %arg7[%c0_77, %c1_78, %c0_79], %102 {strides = array<i32>} : memref<1x8x8xf32, #tpu.memory_space<vmem>>, vector<1x1x8xf32>,
    %c0_80 = arith.constant 0 : index
    %c1_81 = arith.constant 1 : index
    %c0_82 = arith.constant 0 : index
    %123 = vector.load %arg8[%c0_80, %c1_81, %c0_82] : memref<1x8x8xf32, #tpu.memory_space<vmem>>, vector<1x1x8xf32>
    tpu.vector_store %arg8[%c0_80, %c1_81, %c0_82], %104 {strides = array<i32>} : memref<1x8x8xf32, #tpu.memory_space<vmem>>, vector<1x1x8xf32>,
    %c0_83 = arith.constant 0 : index
    %c2_84 = arith.constant 2 : index
    %c0_85 = arith.constant 0 : index
    %124 = vector.load %arg7[%c0_83, %c2_84, %c0_85] : memref<1x8x8xf32, #tpu.memory_space<vmem>>, vector<1x1x8xf32>
    %c0_86 = arith.constant 0 : index
    %c2_87 = arith.constant 2 : index
    %c0_88 = arith.constant 0 : index
    %125 = vector.load %arg8[%c0_86, %c2_87, %c0_88] : memref<1x8x8xf32, #tpu.memory_space<vmem>>, vector<1x1x8xf32>
    %126 = vector.extract_strided_slice %124 {offsets = [0, 0, 2], sizes = [1, 1, 1], strides = [1, 1, 1]} : vector<1x1x8xf32> to vector<1x1x1xf32>
    %cst_89 = arith.constant 0.000000e+00 : f32
    %127 = vector.broadcast %cst_89 : f32 to vector<1x1x1xf32>
    %128 = arith.cmpf oeq, %126, %127 : vector<1x1x1xf32>
    %cst_90 = arith.constant 1.000000e-30 : f32
    %129 = vector.broadcast %cst_90 : f32 to vector<1x1x1xf32>
    %130 = arith.select %128, %129, %126 : vector<1x1x1xi1>, vector<1x1x1xf32>
    %cst_91 = arith.constant 1.000000e+00 : f32
    %131 = vector.broadcast %cst_91 : f32 to vector<1x1x1xf32>
    %132 = arith.divf %131, %130 : vector<1x1x1xf32>
    %133 = vector.broadcast %132 : vector<1x1x1xf32> to vector<1x1x8xf32>
    %134 = arith.mulf %124, %133 : vector<1x1x8xf32>
    %135 = vector.broadcast %132 : vector<1x1x1xf32> to vector<1x1x8xf32>
    %136 = arith.mulf %125, %135 : vector<1x1x8xf32>
    %c0_92 = arith.constant 0 : index
    %c0_93 = arith.constant 0 : index
    %c0_94 = arith.constant 0 : index
    %137 = vector.load %arg7[%c0_92, %c0_93, %c0_94] : memref<1x8x8xf32, #tpu.memory_space<vmem>>, vector<1x8x8xf32>
    %c0_95 = arith.constant 0 : index
    %c0_96 = arith.constant 0 : index
    %c0_97 = arith.constant 0 : index
    %138 = vector.load %arg8[%c0_95, %c0_96, %c0_97] : memref<1x8x8xf32, #tpu.memory_space<vmem>>, vector<1x8x8xf32>
    %139 = vector.extract_strided_slice %137 {offsets = [0, 0, 2], sizes = [1, 8, 1], strides = [1, 1, 1]} : vector<1x8x8xf32> to vector<1x8x1xf32>
    %c2_i32 = arith.constant 2 : i32
    %140 = vector.broadcast %c2_i32 : i32 to vector<1x8x1xi32>
    %141 = arith.cmpi eq, %22, %140 : vector<1x8x1xi32>
    %cst_98 = arith.constant 0.000000e+00 : f32
    %142 = vector.broadcast %cst_98 : f32 to vector<1x8x1xf32>
    %143 = arith.select %141, %142, %139 : vector<1x8x1xi1>, vector<1x8x1xf32>
    %144 = vector.broadcast %143 : vector<1x8x1xf32> to vector<1x8x8xf32>
    %145 = vector.broadcast %134 : vector<1x1x8xf32> to vector<1x8x8xf32>
    %146 = arith.mulf %144, %145 : vector<1x8x8xf32>
    %147 = arith.subf %137, %146 : vector<1x8x8xf32>
    %c0_99 = arith.constant 0 : index
    %c0_100 = arith.constant 0 : index
    %c0_101 = arith.constant 0 : index
    %148 = vector.load %arg7[%c0_99, %c0_100, %c0_101] : memref<1x8x8xf32, #tpu.memory_space<vmem>>, vector<1x8x8xf32>
    tpu.vector_store %arg7[%c0_99, %c0_100, %c0_101], %147 {strides = array<i32>} : memref<1x8x8xf32, #tpu.memory_space<vmem>>, vector<1x8x8xf32>,
    %149 = vector.broadcast %143 : vector<1x8x1xf32> to vector<1x8x8xf32>
    %150 = vector.broadcast %136 : vector<1x1x8xf32> to vector<1x8x8xf32>
    %151 = arith.mulf %149, %150 : vector<1x8x8xf32>
    %152 = arith.subf %138, %151 : vector<1x8x8xf32>
    %c0_102 = arith.constant 0 : index
    %c0_103 = arith.constant 0 : index
    %c0_104 = arith.constant 0 : index
    %153 = vector.load %arg8[%c0_102, %c0_103, %c0_104] : memref<1x8x8xf32, #tpu.memory_space<vmem>>, vector<1x8x8xf32>
    tpu.vector_store %arg8[%c0_102, %c0_103, %c0_104], %152 {strides = array<i32>} : memref<1x8x8xf32, #tpu.memory_space<vmem>>, vector<1x8x8xf32>,
    %c0_105 = arith.constant 0 : index
    %c2_106 = arith.constant 2 : index
    %c0_107 = arith.constant 0 : index
    %154 = vector.load %arg7[%c0_105, %c2_106, %c0_107] : memref<1x8x8xf32, #tpu.memory_space<vmem>>, vector<1x1x8xf32>
    tpu.vector_store %arg7[%c0_105, %c2_106, %c0_107], %134 {strides = array<i32>} : memref<1x8x8xf32, #tpu.memory_space<vmem>>, vector<1x1x8xf32>,
    %c0_108 = arith.constant 0 : index
    %c2_109 = arith.constant 2 : index
    %c0_110 = arith.constant 0 : index
    %155 = vector.load %arg8[%c0_108, %c2_109, %c0_110] : memref<1x8x8xf32, #tpu.memory_space<vmem>>, vector<1x1x8xf32>
    tpu.vector_store %arg8[%c0_108, %c2_109, %c0_110], %136 {strides = array<i32>} : memref<1x8x8xf32, #tpu.memory_space<vmem>>, vector<1x1x8xf32>,
    %c0_111 = arith.constant 0 : index
    %c3_112 = arith.constant 3 : index
    %c0_113 = arith.constant 0 : index
    %156 = vector.load %arg7[%c0_111, %c3_112, %c0_113] : memref<1x8x8xf32, #tpu.memory_space<vmem>>, vector<1x1x8xf32>
    %c0_114 = arith.constant 0 : index
    %c3_115 = arith.constant 3 : index
    %c0_116 = arith.constant 0 : index
    %157 = vector.load %arg8[%c0_114, %c3_115, %c0_116] : memref<1x8x8xf32, #tpu.memory_space<vmem>>, vector<1x1x8xf32>
    %158 = vector.extract_strided_slice %156 {offsets = [0, 0, 3], sizes = [1, 1, 1], strides = [1, 1, 1]} : vector<1x1x8xf32> to vector<1x1x1xf32>
    %cst_117 = arith.constant 0.000000e+00 : f32
    %159 = vector.broadcast %cst_117 : f32 to vector<1x1x1xf32>
    %160 = arith.cmpf oeq, %158, %159 : vector<1x1x1xf32>
    %cst_118 = arith.constant 1.000000e-30 : f32
    %161 = vector.broadcast %cst_118 : f32 to vector<1x1x1xf32>
    %162 = arith.select %160, %161, %158 : vector<1x1x1xi1>, vector<1x1x1xf32>
    %cst_119 = arith.constant 1.000000e+00 : f32
    %163 = vector.broadcast %cst_119 : f32 to vector<1x1x1xf32>
    %164 = arith.divf %163, %162 : vector<1x1x1xf32>
    %165 = vector.broadcast %164 : vector<1x1x1xf32> to vector<1x1x8xf32>
    %166 = arith.mulf %156, %165 : vector<1x1x8xf32>
    %167 = vector.broadcast %164 : vector<1x1x1xf32> to vector<1x1x8xf32>
    %168 = arith.mulf %157, %167 : vector<1x1x8xf32>
    %c0_120 = arith.constant 0 : index
    %c0_121 = arith.constant 0 : index
    %c0_122 = arith.constant 0 : index
    %169 = vector.load %arg7[%c0_120, %c0_121, %c0_122] : memref<1x8x8xf32, #tpu.memory_space<vmem>>, vector<1x8x8xf32>
    %c0_123 = arith.constant 0 : index
    %c0_124 = arith.constant 0 : index
    %c0_125 = arith.constant 0 : index
    %170 = vector.load %arg8[%c0_123, %c0_124, %c0_125] : memref<1x8x8xf32, #tpu.memory_space<vmem>>, vector<1x8x8xf32>
    %171 = vector.extract_strided_slice %169 {offsets = [0, 0, 3], sizes = [1, 8, 1], strides = [1, 1, 1]} : vector<1x8x8xf32> to vector<1x8x1xf32>
    %c3_i32 = arith.constant 3 : i32
    %172 = vector.broadcast %c3_i32 : i32 to vector<1x8x1xi32>
    %173 = arith.cmpi eq, %22, %172 : vector<1x8x1xi32>
    %cst_126 = arith.constant 0.000000e+00 : f32
    %174 = vector.broadcast %cst_126 : f32 to vector<1x8x1xf32>
    %175 = arith.select %173, %174, %171 : vector<1x8x1xi1>, vector<1x8x1xf32>
    %176 = vector.broadcast %175 : vector<1x8x1xf32> to vector<1x8x8xf32>
    %177 = vector.broadcast %166 : vector<1x1x8xf32> to vector<1x8x8xf32>
    %178 = arith.mulf %176, %177 : vector<1x8x8xf32>
    %179 = arith.subf %169, %178 : vector<1x8x8xf32>
    %c0_127 = arith.constant 0 : index
    %c0_128 = arith.constant 0 : index
    %c0_129 = arith.constant 0 : index
    %180 = vector.load %arg7[%c0_127, %c0_128, %c0_129] : memref<1x8x8xf32, #tpu.memory_space<vmem>>, vector<1x8x8xf32>
    tpu.vector_store %arg7[%c0_127, %c0_128, %c0_129], %179 {strides = array<i32>} : memref<1x8x8xf32, #tpu.memory_space<vmem>>, vector<1x8x8xf32>,
    %181 = vector.broadcast %175 : vector<1x8x1xf32> to vector<1x8x8xf32>
    %182 = vector.broadcast %168 : vector<1x1x8xf32> to vector<1x8x8xf32>
    %183 = arith.mulf %181, %182 : vector<1x8x8xf32>
    %184 = arith.subf %170, %183 : vector<1x8x8xf32>
    %c0_130 = arith.constant 0 : index
    %c0_131 = arith.constant 0 : index
    %c0_132 = arith.constant 0 : index
    %185 = vector.load %arg8[%c0_130, %c0_131, %c0_132] : memref<1x8x8xf32, #tpu.memory_space<vmem>>, vector<1x8x8xf32>
    tpu.vector_store %arg8[%c0_130, %c0_131, %c0_132], %184 {strides = array<i32>} : memref<1x8x8xf32, #tpu.memory_space<vmem>>, vector<1x8x8xf32>,
    %c0_133 = arith.constant 0 : index
    %c3_134 = arith.constant 3 : index
    %c0_135 = arith.constant 0 : index
    %186 = vector.load %arg7[%c0_133, %c3_134, %c0_135] : memref<1x8x8xf32, #tpu.memory_space<vmem>>, vector<1x1x8xf32>
    tpu.vector_store %arg7[%c0_133, %c3_134, %c0_135], %166 {strides = array<i32>} : memref<1x8x8xf32, #tpu.memory_space<vmem>>, vector<1x1x8xf32>,
    %c0_136 = arith.constant 0 : index
    %c3_137 = arith.constant 3 : index
    %c0_138 = arith.constant 0 : index
    %187 = vector.load %arg8[%c0_136, %c3_137, %c0_138] : memref<1x8x8xf32, #tpu.memory_space<vmem>>, vector<1x1x8xf32>
    tpu.vector_store %arg8[%c0_136, %c3_137, %c0_138], %168 {strides = array<i32>} : memref<1x8x8xf32, #tpu.memory_space<vmem>>, vector<1x1x8xf32>,
    %c0_139 = arith.constant 0 : index
    %c4_140 = arith.constant 4 : index
    %c0_141 = arith.constant 0 : index
    %188 = vector.load %arg7[%c0_139, %c4_140, %c0_141] : memref<1x8x8xf32, #tpu.memory_space<vmem>>, vector<1x1x8xf32>
    %c0_142 = arith.constant 0 : index
    %c4_143 = arith.constant 4 : index
    %c0_144 = arith.constant 0 : index
    %189 = vector.load %arg8[%c0_142, %c4_143, %c0_144] : memref<1x8x8xf32, #tpu.memory_space<vmem>>, vector<1x1x8xf32>
    %190 = vector.extract_strided_slice %188 {offsets = [0, 0, 4], sizes = [1, 1, 1], strides = [1, 1, 1]} : vector<1x1x8xf32> to vector<1x1x1xf32>
    %cst_145 = arith.constant 0.000000e+00 : f32
    %191 = vector.broadcast %cst_145 : f32 to vector<1x1x1xf32>
    %192 = arith.cmpf oeq, %190, %191 : vector<1x1x1xf32>
    %cst_146 = arith.constant 1.000000e-30 : f32
    %193 = vector.broadcast %cst_146 : f32 to vector<1x1x1xf32>
    %194 = arith.select %192, %193, %190 : vector<1x1x1xi1>, vector<1x1x1xf32>
    %cst_147 = arith.constant 1.000000e+00 : f32
    %195 = vector.broadcast %cst_147 : f32 to vector<1x1x1xf32>
    %196 = arith.divf %195, %194 : vector<1x1x1xf32>
    %197 = vector.broadcast %196 : vector<1x1x1xf32> to vector<1x1x8xf32>
    %198 = arith.mulf %188, %197 : vector<1x1x8xf32>
    %199 = vector.broadcast %196 : vector<1x1x1xf32> to vector<1x1x8xf32>
    %200 = arith.mulf %189, %199 : vector<1x1x8xf32>
    %c0_148 = arith.constant 0 : index
    %c0_149 = arith.constant 0 : index
    %c0_150 = arith.constant 0 : index
    %201 = vector.load %arg7[%c0_148, %c0_149, %c0_150] : memref<1x8x8xf32, #tpu.memory_space<vmem>>, vector<1x8x8xf32>
    %c0_151 = arith.constant 0 : index
    %c0_152 = arith.constant 0 : index
    %c0_153 = arith.constant 0 : index
    %202 = vector.load %arg8[%c0_151, %c0_152, %c0_153] : memref<1x8x8xf32, #tpu.memory_space<vmem>>, vector<1x8x8xf32>
    %203 = vector.extract_strided_slice %201 {offsets = [0, 0, 4], sizes = [1, 8, 1], strides = [1, 1, 1]} : vector<1x8x8xf32> to vector<1x8x1xf32>
    %c4_i32 = arith.constant 4 : i32
    %204 = vector.broadcast %c4_i32 : i32 to vector<1x8x1xi32>
    %205 = arith.cmpi eq, %22, %204 : vector<1x8x1xi32>
    %cst_154 = arith.constant 0.000000e+00 : f32
    %206 = vector.broadcast %cst_154 : f32 to vector<1x8x1xf32>
    %207 = arith.select %205, %206, %203 : vector<1x8x1xi1>, vector<1x8x1xf32>
    %208 = vector.broadcast %207 : vector<1x8x1xf32> to vector<1x8x8xf32>
    %209 = vector.broadcast %198 : vector<1x1x8xf32> to vector<1x8x8xf32>
    %210 = arith.mulf %208, %209 : vector<1x8x8xf32>
    %211 = arith.subf %201, %210 : vector<1x8x8xf32>
    %c0_155 = arith.constant 0 : index
    %c0_156 = arith.constant 0 : index
    %c0_157 = arith.constant 0 : index
    %212 = vector.load %arg7[%c0_155, %c0_156, %c0_157] : memref<1x8x8xf32, #tpu.memory_space<vmem>>, vector<1x8x8xf32>
    tpu.vector_store %arg7[%c0_155, %c0_156, %c0_157], %211 {strides = array<i32>} : memref<1x8x8xf32, #tpu.memory_space<vmem>>, vector<1x8x8xf32>,
    %213 = vector.broadcast %207 : vector<1x8x1xf32> to vector<1x8x8xf32>
    %214 = vector.broadcast %200 : vector<1x1x8xf32> to vector<1x8x8xf32>
    %215 = arith.mulf %213, %214 : vector<1x8x8xf32>
    %216 = arith.subf %202, %215 : vector<1x8x8xf32>
    %c0_158 = arith.constant 0 : index
    %c0_159 = arith.constant 0 : index
    %c0_160 = arith.constant 0 : index
    %217 = vector.load %arg8[%c0_158, %c0_159, %c0_160] : memref<1x8x8xf32, #tpu.memory_space<vmem>>, vector<1x8x8xf32>
    tpu.vector_store %arg8[%c0_158, %c0_159, %c0_160], %216 {strides = array<i32>} : memref<1x8x8xf32, #tpu.memory_space<vmem>>, vector<1x8x8xf32>,
    %c0_161 = arith.constant 0 : index
    %c4_162 = arith.constant 4 : index
    %c0_163 = arith.constant 0 : index
    %218 = vector.load %arg7[%c0_161, %c4_162, %c0_163] : memref<1x8x8xf32, #tpu.memory_space<vmem>>, vector<1x1x8xf32>
    tpu.vector_store %arg7[%c0_161, %c4_162, %c0_163], %198 {strides = array<i32>} : memref<1x8x8xf32, #tpu.memory_space<vmem>>, vector<1x1x8xf32>,
    %c0_164 = arith.constant 0 : index
    %c4_165 = arith.constant 4 : index
    %c0_166 = arith.constant 0 : index
    %219 = vector.load %arg8[%c0_164, %c4_165, %c0_166] : memref<1x8x8xf32, #tpu.memory_space<vmem>>, vector<1x1x8xf32>
    tpu.vector_store %arg8[%c0_164, %c4_165, %c0_166], %200 {strides = array<i32>} : memref<1x8x8xf32, #tpu.memory_space<vmem>>, vector<1x1x8xf32>,
    %c0_167 = arith.constant 0 : index
    %c5 = arith.constant 5 : index
    %c0_168 = arith.constant 0 : index
    %220 = vector.load %arg7[%c0_167, %c5, %c0_168] : memref<1x8x8xf32, #tpu.memory_space<vmem>>, vector<1x1x8xf32>
    %c0_169 = arith.constant 0 : index
    %c5_170 = arith.constant 5 : index
    %c0_171 = arith.constant 0 : index
    %221 = vector.load %arg8[%c0_169, %c5_170, %c0_171] : memref<1x8x8xf32, #tpu.memory_space<vmem>>, vector<1x1x8xf32>
    %222 = vector.extract_strided_slice %220 {offsets = [0, 0, 5], sizes = [1, 1, 1], strides = [1, 1, 1]} : vector<1x1x8xf32> to vector<1x1x1xf32>
    %cst_172 = arith.constant 0.000000e+00 : f32
    %223 = vector.broadcast %cst_172 : f32 to vector<1x1x1xf32>
    %224 = arith.cmpf oeq, %222, %223 : vector<1x1x1xf32>
    %cst_173 = arith.constant 1.000000e-30 : f32
    %225 = vector.broadcast %cst_173 : f32 to vector<1x1x1xf32>
    %226 = arith.select %224, %225, %222 : vector<1x1x1xi1>, vector<1x1x1xf32>
    %cst_174 = arith.constant 1.000000e+00 : f32
    %227 = vector.broadcast %cst_174 : f32 to vector<1x1x1xf32>
    %228 = arith.divf %227, %226 : vector<1x1x1xf32>
    %229 = vector.broadcast %228 : vector<1x1x1xf32> to vector<1x1x8xf32>
    %230 = arith.mulf %220, %229 : vector<1x1x8xf32>
    %231 = vector.broadcast %228 : vector<1x1x1xf32> to vector<1x1x8xf32>
    %232 = arith.mulf %221, %231 : vector<1x1x8xf32>
    %c0_175 = arith.constant 0 : index
    %c0_176 = arith.constant 0 : index
    %c0_177 = arith.constant 0 : index
    %233 = vector.load %arg7[%c0_175, %c0_176, %c0_177] : memref<1x8x8xf32, #tpu.memory_space<vmem>>, vector<1x8x8xf32>
    %c0_178 = arith.constant 0 : index
    %c0_179 = arith.constant 0 : index
    %c0_180 = arith.constant 0 : index
    %234 = vector.load %arg8[%c0_178, %c0_179, %c0_180] : memref<1x8x8xf32, #tpu.memory_space<vmem>>, vector<1x8x8xf32>
    %235 = vector.extract_strided_slice %233 {offsets = [0, 0, 5], sizes = [1, 8, 1], strides = [1, 1, 1]} : vector<1x8x8xf32> to vector<1x8x1xf32>
    %c5_i32 = arith.constant 5 : i32
    %236 = vector.broadcast %c5_i32 : i32 to vector<1x8x1xi32>
    %237 = arith.cmpi eq, %22, %236 : vector<1x8x1xi32>
    %cst_181 = arith.constant 0.000000e+00 : f32
    %238 = vector.broadcast %cst_181 : f32 to vector<1x8x1xf32>
    %239 = arith.select %237, %238, %235 : vector<1x8x1xi1>, vector<1x8x1xf32>
    %240 = vector.broadcast %239 : vector<1x8x1xf32> to vector<1x8x8xf32>
    %241 = vector.broadcast %230 : vector<1x1x8xf32> to vector<1x8x8xf32>
    %242 = arith.mulf %240, %241 : vector<1x8x8xf32>
    %243 = arith.subf %233, %242 : vector<1x8x8xf32>
    %c0_182 = arith.constant 0 : index
    %c0_183 = arith.constant 0 : index
    %c0_184 = arith.constant 0 : index
    %244 = vector.load %arg7[%c0_182, %c0_183, %c0_184] : memref<1x8x8xf32, #tpu.memory_space<vmem>>, vector<1x8x8xf32>
    tpu.vector_store %arg7[%c0_182, %c0_183, %c0_184], %243 {strides = array<i32>} : memref<1x8x8xf32, #tpu.memory_space<vmem>>, vector<1x8x8xf32>,
    %245 = vector.broadcast %239 : vector<1x8x1xf32> to vector<1x8x8xf32>
    %246 = vector.broadcast %232 : vector<1x1x8xf32> to vector<1x8x8xf32>
    %247 = arith.mulf %245, %246 : vector<1x8x8xf32>
    %248 = arith.subf %234, %247 : vector<1x8x8xf32>
    %c0_185 = arith.constant 0 : index
    %c0_186 = arith.constant 0 : index
    %c0_187 = arith.constant 0 : index
    %249 = vector.load %arg8[%c0_185, %c0_186, %c0_187] : memref<1x8x8xf32, #tpu.memory_space<vmem>>, vector<1x8x8xf32>
    tpu.vector_store %arg8[%c0_185, %c0_186, %c0_187], %248 {strides = array<i32>} : memref<1x8x8xf32, #tpu.memory_space<vmem>>, vector<1x8x8xf32>,
    %c0_188 = arith.constant 0 : index
    %c5_189 = arith.constant 5 : index
    %c0_190 = arith.constant 0 : index
    %250 = vector.load %arg7[%c0_188, %c5_189, %c0_190] : memref<1x8x8xf32, #tpu.memory_space<vmem>>, vector<1x1x8xf32>
    tpu.vector_store %arg7[%c0_188, %c5_189, %c0_190], %230 {strides = array<i32>} : memref<1x8x8xf32, #tpu.memory_space<vmem>>, vector<1x1x8xf32>,
    %c0_191 = arith.constant 0 : index
    %c5_192 = arith.constant 5 : index
    %c0_193 = arith.constant 0 : index
    %251 = vector.load %arg8[%c0_191, %c5_192, %c0_193] : memref<1x8x8xf32, #tpu.memory_space<vmem>>, vector<1x1x8xf32>
    tpu.vector_store %arg8[%c0_191, %c5_192, %c0_193], %232 {strides = array<i32>} : memref<1x8x8xf32, #tpu.memory_space<vmem>>, vector<1x1x8xf32>,
    %c0_194 = arith.constant 0 : index
    %c6 = arith.constant 6 : index
    %c0_195 = arith.constant 0 : index
    %252 = vector.load %arg7[%c0_194, %c6, %c0_195] : memref<1x8x8xf32, #tpu.memory_space<vmem>>, vector<1x1x8xf32>
    %c0_196 = arith.constant 0 : index
    %c6_197 = arith.constant 6 : index
    %c0_198 = arith.constant 0 : index
    %253 = vector.load %arg8[%c0_196, %c6_197, %c0_198] : memref<1x8x8xf32, #tpu.memory_space<vmem>>, vector<1x1x8xf32>
    %254 = vector.extract_strided_slice %252 {offsets = [0, 0, 6], sizes = [1, 1, 1], strides = [1, 1, 1]} : vector<1x1x8xf32> to vector<1x1x1xf32>
    %cst_199 = arith.constant 0.000000e+00 : f32
    %255 = vector.broadcast %cst_199 : f32 to vector<1x1x1xf32>
    %256 = arith.cmpf oeq, %254, %255 : vector<1x1x1xf32>
    %cst_200 = arith.constant 1.000000e-30 : f32
    %257 = vector.broadcast %cst_200 : f32 to vector<1x1x1xf32>
    %258 = arith.select %256, %257, %254 : vector<1x1x1xi1>, vector<1x1x1xf32>
    %cst_201 = arith.constant 1.000000e+00 : f32
    %259 = vector.broadcast %cst_201 : f32 to vector<1x1x1xf32>
    %260 = arith.divf %259, %258 : vector<1x1x1xf32>
    %261 = vector.broadcast %260 : vector<1x1x1xf32> to vector<1x1x8xf32>
    %262 = arith.mulf %252, %261 : vector<1x1x8xf32>
    %263 = vector.broadcast %260 : vector<1x1x1xf32> to vector<1x1x8xf32>
    %264 = arith.mulf %253, %263 : vector<1x1x8xf32>
    %c0_202 = arith.constant 0 : index
    %c0_203 = arith.constant 0 : index
    %c0_204 = arith.constant 0 : index
    %265 = vector.load %arg7[%c0_202, %c0_203, %c0_204] : memref<1x8x8xf32, #tpu.memory_space<vmem>>, vector<1x8x8xf32>
    %c0_205 = arith.constant 0 : index
    %c0_206 = arith.constant 0 : index
    %c0_207 = arith.constant 0 : index
    %266 = vector.load %arg8[%c0_205, %c0_206, %c0_207] : memref<1x8x8xf32, #tpu.memory_space<vmem>>, vector<1x8x8xf32>
    %267 = vector.extract_strided_slice %265 {offsets = [0, 0, 6], sizes = [1, 8, 1], strides = [1, 1, 1]} : vector<1x8x8xf32> to vector<1x8x1xf32>
    %c6_i32 = arith.constant 6 : i32
    %268 = vector.broadcast %c6_i32 : i32 to vector<1x8x1xi32>
    %269 = arith.cmpi eq, %22, %268 : vector<1x8x1xi32>
    %cst_208 = arith.constant 0.000000e+00 : f32
    %270 = vector.broadcast %cst_208 : f32 to vector<1x8x1xf32>
    %271 = arith.select %269, %270, %267 : vector<1x8x1xi1>, vector<1x8x1xf32>
    %272 = vector.broadcast %271 : vector<1x8x1xf32> to vector<1x8x8xf32>
    %273 = vector.broadcast %262 : vector<1x1x8xf32> to vector<1x8x8xf32>
    %274 = arith.mulf %272, %273 : vector<1x8x8xf32>
    %275 = arith.subf %265, %274 : vector<1x8x8xf32>
    %c0_209 = arith.constant 0 : index
    %c0_210 = arith.constant 0 : index
    %c0_211 = arith.constant 0 : index
    %276 = vector.load %arg7[%c0_209, %c0_210, %c0_211] : memref<1x8x8xf32, #tpu.memory_space<vmem>>, vector<1x8x8xf32>
    tpu.vector_store %arg7[%c0_209, %c0_210, %c0_211], %275 {strides = array<i32>} : memref<1x8x8xf32, #tpu.memory_space<vmem>>, vector<1x8x8xf32>,
    %277 = vector.broadcast %271 : vector<1x8x1xf32> to vector<1x8x8xf32>
    %278 = vector.broadcast %264 : vector<1x1x8xf32> to vector<1x8x8xf32>
    %279 = arith.mulf %277, %278 : vector<1x8x8xf32>
    %280 = arith.subf %266, %279 : vector<1x8x8xf32>
    %c0_212 = arith.constant 0 : index
    %c0_213 = arith.constant 0 : index
    %c0_214 = arith.constant 0 : index
    %281 = vector.load %arg8[%c0_212, %c0_213, %c0_214] : memref<1x8x8xf32, #tpu.memory_space<vmem>>, vector<1x8x8xf32>
    tpu.vector_store %arg8[%c0_212, %c0_213, %c0_214], %280 {strides = array<i32>} : memref<1x8x8xf32, #tpu.memory_space<vmem>>, vector<1x8x8xf32>,
    %c0_215 = arith.constant 0 : index
    %c6_216 = arith.constant 6 : index
    %c0_217 = arith.constant 0 : index
    %282 = vector.load %arg7[%c0_215, %c6_216, %c0_217] : memref<1x8x8xf32, #tpu.memory_space<vmem>>, vector<1x1x8xf32>
    tpu.vector_store %arg7[%c0_215, %c6_216, %c0_217], %262 {strides = array<i32>} : memref<1x8x8xf32, #tpu.memory_space<vmem>>, vector<1x1x8xf32>,
    %c0_218 = arith.constant 0 : index
    %c6_219 = arith.constant 6 : index
    %c0_220 = arith.constant 0 : index
    %283 = vector.load %arg8[%c0_218, %c6_219, %c0_220] : memref<1x8x8xf32, #tpu.memory_space<vmem>>, vector<1x1x8xf32>
    tpu.vector_store %arg8[%c0_218, %c6_219, %c0_220], %264 {strides = array<i32>} : memref<1x8x8xf32, #tpu.memory_space<vmem>>, vector<1x1x8xf32>,
    %c0_221 = arith.constant 0 : index
    %c7 = arith.constant 7 : index
    %c0_222 = arith.constant 0 : index
    %284 = vector.load %arg7[%c0_221, %c7, %c0_222] : memref<1x8x8xf32, #tpu.memory_space<vmem>>, vector<1x1x8xf32>
    %c0_223 = arith.constant 0 : index
    %c7_224 = arith.constant 7 : index
    %c0_225 = arith.constant 0 : index
    %285 = vector.load %arg8[%c0_223, %c7_224, %c0_225] : memref<1x8x8xf32, #tpu.memory_space<vmem>>, vector<1x1x8xf32>
    %286 = vector.extract_strided_slice %284 {offsets = [0, 0, 7], sizes = [1, 1, 1], strides = [1, 1, 1]} : vector<1x1x8xf32> to vector<1x1x1xf32>
    %cst_226 = arith.constant 0.000000e+00 : f32
    %287 = vector.broadcast %cst_226 : f32 to vector<1x1x1xf32>
    %288 = arith.cmpf oeq, %286, %287 : vector<1x1x1xf32>
    %cst_227 = arith.constant 1.000000e-30 : f32
    %289 = vector.broadcast %cst_227 : f32 to vector<1x1x1xf32>
    %290 = arith.select %288, %289, %286 : vector<1x1x1xi1>, vector<1x1x1xf32>
    %cst_228 = arith.constant 1.000000e+00 : f32
    %291 = vector.broadcast %cst_228 : f32 to vector<1x1x1xf32>
    %292 = arith.divf %291, %290 : vector<1x1x1xf32>
    %293 = vector.broadcast %292 : vector<1x1x1xf32> to vector<1x1x8xf32>
    %294 = arith.mulf %284, %293 : vector<1x1x8xf32>
    %295 = vector.broadcast %292 : vector<1x1x1xf32> to vector<1x1x8xf32>
    %296 = arith.mulf %285, %295 : vector<1x1x8xf32>
    %c0_229 = arith.constant 0 : index
    %c0_230 = arith.constant 0 : index
    %c0_231 = arith.constant 0 : index
    %297 = vector.load %arg7[%c0_229, %c0_230, %c0_231] : memref<1x8x8xf32, #tpu.memory_space<vmem>>, vector<1x8x8xf32>
    %c0_232 = arith.constant 0 : index
    %c0_233 = arith.constant 0 : index
    %c0_234 = arith.constant 0 : index
    %298 = vector.load %arg8[%c0_232, %c0_233, %c0_234] : memref<1x8x8xf32, #tpu.memory_space<vmem>>, vector<1x8x8xf32>
    %299 = vector.extract_strided_slice %297 {offsets = [0, 0, 7], sizes = [1, 8, 1], strides = [1, 1, 1]} : vector<1x8x8xf32> to vector<1x8x1xf32>
    %c7_i32 = arith.constant 7 : i32
    %300 = vector.broadcast %c7_i32 : i32 to vector<1x8x1xi32>
    %301 = arith.cmpi eq, %22, %300 : vector<1x8x1xi32>
    %cst_235 = arith.constant 0.000000e+00 : f32
    %302 = vector.broadcast %cst_235 : f32 to vector<1x8x1xf32>
    %303 = arith.select %301, %302, %299 : vector<1x8x1xi1>, vector<1x8x1xf32>
    %304 = vector.broadcast %303 : vector<1x8x1xf32> to vector<1x8x8xf32>
    %305 = vector.broadcast %294 : vector<1x1x8xf32> to vector<1x8x8xf32>
    %306 = arith.mulf %304, %305 : vector<1x8x8xf32>
    %307 = arith.subf %297, %306 : vector<1x8x8xf32>
    %c0_236 = arith.constant 0 : index
    %c0_237 = arith.constant 0 : index
    %c0_238 = arith.constant 0 : index
    %308 = vector.load %arg7[%c0_236, %c0_237, %c0_238] : memref<1x8x8xf32, #tpu.memory_space<vmem>>, vector<1x8x8xf32>
    tpu.vector_store %arg7[%c0_236, %c0_237, %c0_238], %307 {strides = array<i32>} : memref<1x8x8xf32, #tpu.memory_space<vmem>>, vector<1x8x8xf32>,
    %309 = vector.broadcast %303 : vector<1x8x1xf32> to vector<1x8x8xf32>
    %310 = vector.broadcast %296 : vector<1x1x8xf32> to vector<1x8x8xf32>
    %311 = arith.mulf %309, %310 : vector<1x8x8xf32>
    %312 = arith.subf %298, %311 : vector<1x8x8xf32>
    %c0_239 = arith.constant 0 : index
    %c0_240 = arith.constant 0 : index
    %c0_241 = arith.constant 0 : index
    %313 = vector.load %arg8[%c0_239, %c0_240, %c0_241] : memref<1x8x8xf32, #tpu.memory_space<vmem>>, vector<1x8x8xf32>
    tpu.vector_store %arg8[%c0_239, %c0_240, %c0_241], %312 {strides = array<i32>} : memref<1x8x8xf32, #tpu.memory_space<vmem>>, vector<1x8x8xf32>,
    %c0_242 = arith.constant 0 : index
    %c7_243 = arith.constant 7 : index
    %c0_244 = arith.constant 0 : index
    %314 = vector.load %arg7[%c0_242, %c7_243, %c0_244] : memref<1x8x8xf32, #tpu.memory_space<vmem>>, vector<1x1x8xf32>
    tpu.vector_store %arg7[%c0_242, %c7_243, %c0_244], %294 {strides = array<i32>} : memref<1x8x8xf32, #tpu.memory_space<vmem>>, vector<1x1x8xf32>,
    %c0_245 = arith.constant 0 : index
    %c7_246 = arith.constant 7 : index
    %c0_247 = arith.constant 0 : index
    %315 = vector.load %arg8[%c0_245, %c7_246, %c0_247] : memref<1x8x8xf32, #tpu.memory_space<vmem>>, vector<1x1x8xf32>
    tpu.vector_store %arg8[%c0_245, %c7_246, %c0_247], %296 {strides = array<i32>} : memref<1x8x8xf32, #tpu.memory_space<vmem>>, vector<1x1x8xf32>,
    %c0_248 = arith.constant 0 : index
    %c0_249 = arith.constant 0 : index
    %c0_250 = arith.constant 0 : index
    %316 = vector.load %arg8[%c0_248, %c0_249, %c0_250] : memref<1x8x8xf32, #tpu.memory_space<vmem>>, vector<1x8x8xf32>
    %317 = vector.shape_cast %19 : vector<8x8xf32> to vector<1x8x8xf32>
    %318 = arith.mulf %316, %317 : vector<1x8x8xf32>
    %cst_251 = arith.constant dense<0.000000e+00> : vector<1x8xf32>
    %319 = vector.multi_reduction <add>, %318, %cst_251 [2] : vector<1x8x8xf32> to vector<1x8xf32>
    %320 = vector.shape_cast %319 : vector<1x8xf32> to vector<1x8x1xf32>
    %321 = vector.extract_strided_slice %316 {offsets = [0, 0, 0], sizes = [1, 8, 1], strides = [1, 1, 1]} : vector<1x8x8xf32> to vector<1x8x1xf32>
    %322 = arith.mulf %42, %321 : vector<1x8x1xf32>
    %c0_i32_252 = arith.constant 0 : i32
    %323 = vector.broadcast %c0_i32_252 : i32 to vector<1x8x8xi32>
    %324 = arith.cmpi eq, %20, %323 : vector<1x8x8xi32>
    %325 = vector.broadcast %320 : vector<1x8x1xf32> to vector<1x8x8xf32>
    %326 = arith.mulf %40, %325 : vector<1x8x8xf32>
    %cst_253 = arith.constant 0.000000e+00 : f32
    %327 = vector.broadcast %cst_253 : f32 to vector<1x8x8xf32>
    %328 = arith.select %324, %327, %326 : vector<1x8x8xi1>, vector<1x8x8xf32>
    %c0_i32_254 = arith.constant 0 : i32
    %329 = vector.broadcast %c0_i32_254 : i32 to vector<1x8x8xi32>
    %330 = arith.cmpi eq, %21, %329 : vector<1x8x8xi32>
    %331 = arith.mulf %40, %316 : vector<1x8x8xf32>
    %cst_255 = arith.constant 0.000000e+00 : f32
    %332 = vector.broadcast %cst_255 : f32 to vector<1x8x8xf32>
    %333 = arith.select %330, %332, %331 : vector<1x8x8xi1>, vector<1x8x8xf32>
    %334 = arith.subf %328, %333 : vector<1x8x8xf32>
    %335 = vector.shape_cast %13 : vector<1x16xf32> to vector<1x1x16xf32>
    %336 = vector.broadcast %322 : vector<1x8x1xf32> to vector<1x8x16xf32>
    %337 = vector.broadcast %335 : vector<1x1x16xf32> to vector<1x8x16xf32>
    %338 = arith.mulf %336, %337 : vector<1x8x16xf32>
    %cst_256 = arith.constant dense<0.000000e+00> : vector<1x8x16xf32>
    %339 = tpu.matmul %334, %3, %cst_256 {dimension_numbers = #tpu.dot_dimension_numbers<[2], [1], [1], [2], [0, 0, 0, 1, 1, 2], [0], [0]>} : vector<1x8x8xf32>, vector<1x8x16xf32>, vector<1x8x16xf32> -> vector<1x8x16xf32>
    %340 = arith.addf %338, %339 : vector<1x8x16xf32>
    %cst_257 = arith.constant dense<0.000000e+00> : vector<1x8x16xf32>
    %341 = tpu.matmul %334, %3, %cst_257 {dimension_numbers = #tpu.dot_dimension_numbers<[1], [1], [2], [2], [0, 0, 0, 2, 1, 2], [0], [0]>} : vector<1x8x8xf32>, vector<1x8x16xf32>, vector<1x8x16xf32> -> vector<1x8x16xf32>
    %342 = tpu.concatenate %3, %340, %341 in 2 : vector<1x8x16xf32>, vector<1x8x16xf32>, vector<1x8x16xf32> -> vector<1x8x48xf32>
    %c0_258 = arith.constant 0 : index
    %c0_259 = arith.constant 0 : index
    %343 = vector.load %arg3[%c0_258, %c0_259] : memref<48x128xf32, #tpu.memory_space<vmem>>, vector<48x128xf32>
    %cst_260 = arith.constant dense<0.000000e+00> : vector<1x8x128xf32>
    %344 = tpu.matmul %342, %343, %cst_260 {dimension_numbers = #tpu.dot_dimension_numbers<[2], [0], [0, 1], [1], [0, 0, 0, 1, 1, 1], [], []>} : vector<1x8x48xf32>, vector<48x128xf32>, vector<1x8x128xf32> -> vector<1x8x128xf32>
    %345 = vector.shape_cast %12 : vector<1x128xf32> to vector<1x1x128xf32>
    %346 = vector.broadcast %345 : vector<1x1x128xf32> to vector<1x8x128xf32>
    %347 = arith.addf %344, %346 : vector<1x8x128xf32>
    %cst_261 = arith.constant 0.000000e+00 : f32
    %348 = vector.broadcast %cst_261 : f32 to vector<1x8x128xf32>
    %349 = arith.maximumf %347, %348 : vector<1x8x128xf32>
    %c0_262 = arith.constant 0 : index
    %c0_263 = arith.constant 0 : index
    %c0_264 = arith.constant 0 : index
    %350 = vector.load %arg5[%c0_262, %c0_263, %c0_264] : memref<1x8x128xf32, #tpu.memory_space<vmem>>, vector<1x8x128xf32>
    tpu.vector_store %arg5[%c0_262, %c0_263, %c0_264], %349 {strides = array<i32>} : memref<1x8x128xf32, #tpu.memory_space<vmem>>, vector<1x8x128xf32>,
    %cst_265 = arith.constant 0.000000e+00 : f32
    %351 = vector.broadcast %cst_265 : f32 to vector<1x8x119xf32>
    %352 = tpu.concatenate %322, %334, %351 in 2 : vector<1x8x1xf32>, vector<1x8x8xf32>, vector<1x8x119xf32> -> vector<1x8x128xf32>
    %c0_266 = arith.constant 0 : index
    %c0_267 = arith.constant 0 : index
    %c0_268 = arith.constant 0 : index
    %353 = vector.load %arg6[%c0_266, %c0_267, %c0_268] : memref<1x8x128xf32, #tpu.memory_space<vmem>>, vector<1x8x128xf32>
    tpu.vector_store %arg6[%c0_266, %c0_267, %c0_268], %352 {strides = array<i32>} : memref<1x8x128xf32, #tpu.memory_space<vmem>>, vector<1x8x128xf32>,
    return
  }
  func.func @transform_0(%arg0: i32) -> (i32, i32, i32) {
    %c0_i32 = arith.constant 0 : i32
    %c0_i32_0 = arith.constant 0 : i32
    %c0_i32_1 = arith.constant 0 : i32
    return %arg0, %c0_i32, %c0_i32_0 : i32, i32, i32
  }
  func.func @transform_1(%arg0: i32) -> (i32, i32) {
    %c0_i32 = arith.constant 0 : i32
    %c0_i32_0 = arith.constant 0 : i32
    %c0_i32_1 = arith.constant 0 : i32
    return %c0_i32, %c0_i32_0 : i32, i32
  }
  func.func @transform_2(%arg0: i32) -> (i32, i32) {
    %c0_i32 = arith.constant 0 : i32
    %c0_i32_0 = arith.constant 0 : i32
    %c0_i32_1 = arith.constant 0 : i32
    return %c0_i32, %c0_i32_0 : i32, i32
  }
  func.func @transform_3(%arg0: i32) -> (i32, i32) {
    %c0_i32 = arith.constant 0 : i32
    %c0_i32_0 = arith.constant 0 : i32
    %c0_i32_1 = arith.constant 0 : i32
    return %c0_i32, %c0_i32_0 : i32, i32
  }
  func.func @transform_4(%arg0: i32) -> (i32, i32, i32) {
    %c0_i32 = arith.constant 0 : i32
    %c0_i32_0 = arith.constant 0 : i32
    %c0_i32_1 = arith.constant 0 : i32
    return %arg0, %c0_i32, %c0_i32_0 : i32, i32, i32
  }
  func.func @transform_5(%arg0: i32) -> (i32, i32, i32) {
    %c0_i32 = arith.constant 0 : i32
    %c0_i32_0 = arith.constant 0 : i32
    %c0_i32_1 = arith.constant 0 : i32
    return %arg0, %c0_i32, %c0_i32_0 : i32, i32, i32
  }
}

</mosaic_0001>

<llo_original>
// kernel: tpu_custom_call.1
$region0: #{tpu_custom_call.1}
  #allocation0 [shape = 'u32[]', space=smem, size = 0x4, offset = 0x4, fixed_abs, tag = 'smem constant byte address 0x4 - core index']
  #allocation1 [shape = 'u32[144,128]{1,0:T(1,128)}', space=vmem, size = 0x12000, scoped, tag = 'internal scratch']
  #allocation2 [shape = 'f32[1,8,8]{2,1,0:T(8,128)}', space=vmem, size = 0x1000, scoped, tag = 'scratch operand']
  #allocation3 [shape = 'f32[1,8,8]{2,1,0:T(8,128)}', space=vmem, size = 0x1000, scoped, tag = 'scratch operand']
  %s0 = inlined_call_operand.vmem [shape: f32[2,8,32], index: 0, kind: input, shape index: {}]
  %s1 = inlined_call_operand.vmem [shape: f32[48,16], index: 1, kind: input, shape index: {}]
  %s2 = inlined_call_operand.vmem [shape: f32[48,128], index: 2, kind: input, shape index: {}]
  %s3 = inlined_call_operand.vmem [shape: f32[8,128], index: 3, kind: input, shape index: {}]
  %s4 = inlined_call_operand.hbm [shape: f32[2,8,128], index: 4, kind: output, shape index: {0}]
  %s5 = inlined_call_operand.hbm [shape: f32[2,8,128], index: 5, kind: output, shape index: {1}]
  %6 = xla_tuple %s4, %s5
  %s7 = sld [smem:[#allocation0]]
  $region57: #{tpu_custom_call.1} parent=0
    _
  %s9 = ssub.s32 1, %s7
  %s10 = scalar_select 0, %s9, %s7
  $region1: #{tpu_custom_call.1} parent=0
    #allocation4 [shape = 'u8[8192]{0}', space=vmem, size = 0x2000, scoped, tag = 'output window, operand 0']
    #allocation5 [shape = 's32[2]{0}', space=sflag, size = 0x8, scoped, tag = 'scoped memory for tpu_custom_call.1']
    #allocation6 [shape = 'u8[8192]{0}', space=vmem, size = 0x2000, scoped, tag = 'output window, operand 1']
    #allocation7 [shape = 's32[2]{0}', space=sflag, size = 0x8, scoped, tag = 'scoped memory for tpu_custom_call.1']
    %11 = vsyncpa [#allocation5], 0
    %s12 = scalar_lea.sflag [#allocation5], 1
    %13 = vsyncpa %s12, 0
    %14 = vsyncpa [#allocation7], 0
    %s15 = scalar_lea.sflag [#allocation7], 1
    %16 = vsyncpa %s15, 0
    loop: start=0, step=1, limit=4
    $region2: #{tpu_custom_call.1} parent=1 // loop_pre_header
      _
    $region3: #{tpu_custom_call.1} parent=1 // loop_header
      %s18 = sphi 0, %s22
      %p19 = scmp.ge.s32.totalorder %s18, 4
      %s28 = sphi 0, %s30
      %s31 = sphi 0, %s28
      %s32 = sphi 0, %s31
      %s48 = sphi 0, %s32
      %s52 = sphi 0, %s52
      %s54 = sphi 0, %s52
      %s55 = sphi 0, %s54
      %s69 = sphi 0, %s55
      %s73 = sphi 0, %s73
      %s75 = sphi 0, %s73
      %s76 = sphi 0, %s75
      %s90 = sphi 0, %s76
      %s94 = sphi 0, %s94
      %s96 = sphi 0, %s94
      %s97 = sphi 0, %s96
      %s111 = sphi 0, %s97
      %s117 = sphi 0, %s119
      %s120 = sphi 0, %s117
      %s121 = sphi 0, %s120
      %s137 = sphi 0, %s121
      %s143 = sphi 0, %s145
      %s146 = sphi 0, %s143
      %s147 = sphi 0, %s146
      %s163 = sphi 0, %s147
    $region4: #{tpu_custom_call.1} parent=1 // loop_header_branch
      %21 = sbr.rel (%p19) target = $region8
    $region5: #{tpu_custom_call.1} parent=1 // loop_body
      %s23 = ssub.s32 %s18, 1
      %s24 = ssub.s32 %s18, 2
      %s25 = sadd.s32 %s18, 1
      %s26 = ssub.s32 %s18, %s25
      %p27 = scmp.eq.s32.totalorder %s26, 0
      %s29 = sadd.s32 %s28, 1
      %s30 = scalar_select %p27, %s28, %s29
      %p33 = pneg %p27
      %p34 = scmp.eq.s32.totalorder %s18, 1
      %p35 = por %p33, %p34
      %p36 = scmp.ne.s32.totalorder %s28, %s31
      %p37 = scmp.eq.s32.totalorder %s18, 0
      %p38 = por %p36, %p37
      %p39 = scmp.ne.s32.totalorder %s28, %s31
      %p40 = scmp.eq.s32.totalorder %s23, 1
      %p41 = por %p39, %p40
      %p42 = scmp.ne.s32.totalorder %s31, %s32
      %p43 = scmp.eq.s32.totalorder %s23, 0
      %p44 = por %p42, %p43
      %p45 = scmp.ne.s32.totalorder %s31, %s32
      %p46 = scmp.eq.s32.totalorder %s24, 1
      %p47 = por %p45, %p46
      %p49 = scmp.ne.s32.totalorder %s32, %s48
      %p50 = scmp.eq.s32.totalorder %s24, 0
      %p51 = por %p49, %p50
      %s53 = sadd.s32 %s52, 1
      %p56 = scmp.eq.s32.totalorder %s18, 1
      %p57 = scmp.ne.s32.totalorder %s52, %s54
      %p58 = scmp.eq.s32.totalorder %s18, 0
      %p59 = por %p57, %p58
      %p60 = scmp.ne.s32.totalorder %s52, %s54
      %p61 = scmp.eq.s32.totalorder %s23, 1
      %p62 = por %p60, %p61
      %p63 = scmp.ne.s32.totalorder %s54, %s55
      %p64 = scmp.eq.s32.totalorder %s23, 0
      %p65 = por %p63, %p64
      %p66 = scmp.ne.s32.totalorder %s54, %s55
      %p67 = scmp.eq.s32.totalorder %s24, 1
      %p68 = por %p66, %p67
      %p70 = scmp.ne.s32.totalorder %s55, %s69
      %p71 = scmp.eq.s32.totalorder %s24, 0
      %p72 = por %p70, %p71
      %s74 = sadd.s32 %s73, 1
      %p77 = scmp.eq.s32.totalorder %s18, 1
      %p78 = scmp.ne.s32.totalorder %s73, %s75
      %p79 = scmp.eq.s32.totalorder %s18, 0
      %p80 = por %p78, %p79
      %p81 = scmp.ne.s32.totalorder %s73, %s75
      %p82 = scmp.eq.s32.totalorder %s23, 1
      %p83 = por %p81, %p82
      %p84 = scmp.ne.s32.totalorder %s75, %s76
      %p85 = scmp.eq.s32.totalorder %s23, 0
      %p86 = por %p84, %p85
      %p87 = scmp.ne.s32.totalorder %s75, %s76
      %p88 = scmp.eq.s32.totalorder %s24, 1
      %p89 = por %p87, %p88
      %p91 = scmp.ne.s32.totalorder %s76, %s90
      %p92 = scmp.eq.s32.totalorder %s24, 0
      %p93 = por %p91, %p92
      %s95 = sadd.s32 %s94, 1
      %p98 = scmp.eq.s32.totalorder %s18, 1
      %p99 = scmp.ne.s32.totalorder %s94, %s96
      %p100 = scmp.eq.s32.totalorder %s18, 0
      %p101 = por %p99, %p100
      %p102 = scmp.ne.s32.totalorder %s94, %s96
      %p103 = scmp.eq.s32.totalorder %s23, 1
      %p104 = por %p102, %p103
      %p105 = scmp.ne.s32.totalorder %s96, %s97
      %p106 = scmp.eq.s32.totalorder %s23, 0
      %p107 = por %p105, %p106
      %p108 = scmp.ne.s32.totalorder %s96, %s97
      %p109 = scmp.eq.s32.totalorder %s24, 1
      %p110 = por %p108, %p109
      %p112 = scmp.ne.s32.totalorder %s97, %s111
      %p113 = scmp.eq.s32.totalorder %s24, 0
      %p114 = por %p112, %p113
      %s115 = ssub.s32 %s18, %s25
      %p116 = scmp.eq.s32.totalorder %s115, 0
      %s118 = sadd.s32 %s117, 1
      %s119 = scalar_select %p116, %s117, %s118
      %p122 = pneg %p116
      %p123 = scmp.eq.s32.totalorder %s18, 1
      %p124 = por %p122, %p123
      %p125 = scmp.ne.s32.totalorder %s117, %s120
      %p126 = scmp.eq.s32.totalorder %s18, 0
      %p127 = por %p125, %p126
      %p128 = scmp.ne.s32.totalorder %s117, %s120
      %p129 = scmp.eq.s32.totalorder %s23, 1
      %p130 = por %p128, %p129
      %p131 = scmp.ne.s32.totalorder %s120, %s121
      %p132 = scmp.eq.s32.totalorder %s23, 0
      %p133 = por %p131, %p132
      %p134 = scmp.ne.s32.totalorder %s120, %s121
      %p135 = scmp.eq.s32.totalorder %s24, 1
      %p136 = por %p134, %p135
      %p138 = scmp.ne.s32.totalorder %s121, %s137
      %p139 = scmp.eq.s32.totalorder %s24, 0
      %p140 = por %p138, %p139
      %s141 = ssub.s32 %s18, %s25
      %p142 = scmp.eq.s32.totalorder %s141, 0
      %s144 = sadd.s32 %s143, 1
      %s145 = scalar_select %p142, %s143, %s144
      %p148 = pneg %p142
      %p149 = scmp.eq.s32.totalorder %s18, 1
      %p150 = por %p148, %p149
      %p151 = scmp.ne.s32.totalorder %s143, %s146
      %p152 = scmp.eq.s32.totalorder %s18, 0
      %p153 = por %p151, %p152
      %p154 = scmp.ne.s32.totalorder %s143, %s146
      %p155 = scmp.eq.s32.totalorder %s23, 1
      %p156 = por %p154, %p155
      %p157 = scmp.ne.s32.totalorder %s146, %s147
      %p158 = scmp.eq.s32.totalorder %s23, 0
      %p159 = por %p157, %p158
      %p160 = scmp.ne.s32.totalorder %s146, %s147
      %p161 = scmp.eq.s32.totalorder %s24, 1
      %p162 = por %p160, %p161
      %p164 = scmp.ne.s32.totalorder %s147, %s163
      %p165 = scmp.eq.s32.totalorder %s24, 0
      %p166 = por %p164, %p165
      %p167 = scmp.le.s32.totalorder 1, %s18
      %p168 = scmp.lt.s32.totalorder %s18, 3
      %p169 = pnand %p167, %p168
      %p170 = pneg %p169
      // Predicated region
      $region9: #{tpu_custom_call.1} parent=5 // pred_check
        _
      $region10: #{tpu_custom_call.1} parent=5 // pred_check_branch
        %172 = sbr.rel (%p169) target = $region12
      $region11: #{tpu_custom_call.1} parent=5 // pred_region
        %s173 = ssub.s32 %s18, 1
        // Predicated region
        $region13: #{tpu_custom_call.1} parent=11 // pred_check
          %p174 = pneg %p65
        $region14: #{tpu_custom_call.1} parent=11 // pred_check_branch
          %176 = sbr.rel (%p174) target = $region16
        $region15: #{tpu_custom_call.1} parent=11 // pred_region
          _
        $region16: #{tpu_custom_call.1} parent=11 // pred_fallthru
          _
        // Predicated region
        $region17: #{tpu_custom_call.1} parent=11 // pred_check
          %p177 = pneg %p86
        $region18: #{tpu_custom_call.1} parent=11 // pred_check_branch
          %179 = sbr.rel (%p177) target = $region20
        $region19: #{tpu_custom_call.1} parent=11 // pred_region
          _
        $region20: #{tpu_custom_call.1} parent=11 // pred_fallthru
          _
        // Predicated region
        $region21: #{tpu_custom_call.1} parent=11 // pred_check
          %p180 = pneg %p107
        $region22: #{tpu_custom_call.1} parent=11 // pred_check_branch
          %182 = sbr.rel (%p180) target = $region24
        $region23: #{tpu_custom_call.1} parent=11 // pred_region
          _
        $region24: #{tpu_custom_call.1} parent=11 // pred_fallthru
          _
      $region12: #{tpu_custom_call.1} parent=5 // pred_fallthru
        _
      %p183 = scmp.lt.s32.totalorder %s18, 2
      // Predicated region
      $region25: #{tpu_custom_call.1} parent=5 // pred_check
        %p184 = pneg %p183
      $region26: #{tpu_custom_call.1} parent=5 // pred_check_branch
        %186 = sbr.rel (%p184) target = $region28
      $region27: #{tpu_custom_call.1} parent=5 // pred_region
        // Predicated region
        $region29: #{tpu_custom_call.1} parent=27 // pred_check
          %p187 = pneg %p38
        $region30: #{tpu_custom_call.1} parent=27 // pred_check_branch
          %189 = sbr.rel (%p187) target = $region32
        $region31: #{tpu_custom_call.1} parent=27 // pred_region
          %p190 = scmp.lt.s32.totalorder %s18, 1
          %s191 = scalar_select %p190, %s18, 1
          %s192 = smul.addr %s191, 8
          %s193 = scalar_lea.vmem %s0, %s192
        $region32: #{tpu_custom_call.1} parent=27 // pred_fallthru
          _
      $region28: #{tpu_custom_call.1} parent=5 // pred_fallthru
        _
      %p194 = scmp.le.s32.totalorder 1, %s18
      %p195 = scmp.lt.s32.totalorder %s18, 3
      %p196 = pnand %p194, %p195
      %p197 = pneg %p196
      // Predicated region
      $region33: #{tpu_custom_call.1} parent=5 // pred_check
        _
      $region34: #{tpu_custom_call.1} parent=5 // pred_check_branch
        %199 = sbr.rel (%p196) target = $region36
      $region35: #{tpu_custom_call.1} parent=5 // pred_region
        %s200 = ssub.s32 %s18, 1
        %p201 = scmp.lt.s32.totalorder %s23, 1
        %s202 = scalar_select %p201, %s23, 1
        %s203 = smul.addr %s202, 8
        %s204 = scalar_lea.vmem %s0, %s203
        %p205 = pneg %p44
        %p206 = pneg %p41
        %p207 = pneg %p65
        %p208 = pneg %p62
        %p209 = pneg %p86
        %p210 = pneg %p83
        %p211 = pneg %p107
        %p212 = pneg %p104
        %p213 = pneg %p133
        %p214 = pneg %p130
        %s215 = sand.u32 %s120, 1
        %s216 = scalar_lea.sflag [#allocation5], %s215
        %s217 = sand.u32 %s120, 1
        %s218 = smul.addr %s217, 8
        %s219 = scalar_lea.vmem [#allocation4], %s218
        %p220 = pneg %p159
        %p221 = pneg %p156
        %s222 = sand.u32 %s146, 1
        %s223 = scalar_lea.sflag [#allocation7], %s222
        %s224 = sand.u32 %s146, 1
        %s225 = smul.addr %s224, 8
        %s226 = scalar_lea.vmem [#allocation6], %s225
        %p227 = scmp.lt.s32.totalorder %s23, 1
        %s228 = scalar_select %p227, %s23, 1
        %s229 = smul.addr %s228, 8
        %s230 = scalar_lea.vmem %s0, %s229
        %v231 = vld [vmem:[%s230] sm:$0xff]
        %233 = vrot.lane.b32.xlu0 %v231, 120
        %v234 = vpop.permute.xlu0 %233
        %vm236 = vcmask 64512
        %v237 = vsel %vm236, %v231, %v234
        %238 = vrot.lane.b32.xlu0 %v231, 112
        %v239 = vpop.permute.xlu0 %238
        %v241 = vsel %vm236, %v234, %v239
        %v242 = vld [vmem:[%s1] sm:$0xff]
        %v243 = vld [vmem:[%s1 + $0x8] sm:$0xff]
        %v244 = vld [vmem:[%s1 + $0x10] sm:$0xff]
        %v245 = vld [vmem:[%s1 + $0x18] sm:$0xff]
        %v246 = vld [vmem:[%s1 + $0x20] sm:$0xff]
        %v247 = vld [vmem:[%s1 + $0x28] sm:$0xff]
        %v248 = vld [vmem:[%s3] sm:$0x1]
        %v249 = vld [vmem:[%s3 + $0x1] sm:$0x1]
        %v250 = vld [vmem:[%s3 + $0x2] sm:$0x1]
        %v251 = vld [vmem:[%s3 + $0x3] sm:$0x1]
        %v252 = vld [vmem:[%s3 + $0x4] sm:$0x1]
        %v253 = vlaneseq
        %v254 = vshrl.u32 %v253, 7
        %v255 = vlaneseq
        %v256 = vand.u32 %v255, 127
        %vm257 = vcmp.eq.s32.totalorder %v254, %v256
        %v258 = vsel %vm257, 1, 0
        %v259 = vcvt.s32.f32 %v258
        %v260 = vlaneseq
        %v261 = vshrl.u32 %v260, 7
        %v262 = vsub.s32 0, %v261
        %v263 = vrot.slane %v248, %v262
        %vm264 = vcmask 130048
        %v266 = vsel %vm264, %v241, 0
        %268 = vmatprep.subr.mxu0 0.0
        %269 = vmatpush1.msra.mxu0 %v242
        %270 = vmatprep.subr.mxu0 0.0
        %271 = vmatpush1.msra.mxu0 %v243
        %272 = vmatprep.subr.mxu0 0.0
        %273 = vmatpush1.msra.mxu0 0.0
        %274 = vmatprep.subr.mxu0 0.0
        %275 = vmatpush1.msra.mxu0 0.0
        %276 = vmatprep.subr.mxu0 0.0
        %277 = vmatpush1.msra.mxu0 0.0
        %278 = vmatprep.subr.mxu0 0.0
        %279 = vmatpush1.msra.mxu0 0.0
        %280 = vmatprep.subr.mxu0 0.0
        %281 = vmatpush1.msra.mxu0 0.0
        %282 = vmatprep.subr.mxu0 0.0
        %283 = vmatpush1.msra.mxu0 0.0
        %284 = vmatprep.subr.mxu0 0.0
        %285 = vmatpush1.msra.mxu0 0.0
        %286 = vmatprep.subr.mxu0 0.0
        %287 = vmatpush1.msra.mxu0 0.0
        %288 = vmatprep.subr.mxu0 0.0
        %289 = vmatpush1.msra.mxu0 0.0
        %290 = vmatprep.subr.mxu0 0.0
        %291 = vmatpush1.msra.mxu0 0.0
        %292 = vmatprep.subr.mxu0 0.0
        %293 = vmatpush1.msra.mxu0 0.0
        %294 = vmatprep.subr.mxu0 0.0
        %295 = vmatpush1.msra.mxu0 0.0
        %296 = vmatprep.subr.mxu0 0.0
        %297 = vmatpush1.msra.mxu0 0.0
        %298 = vmatprep.subr.mxu0 0.0
        %299 = vmatpush1.msra.mxu0 0.0
        %300 = vmatprep.subr.mxu0 0.0
        %301 = vmatpush1.msra.mxu0 0.0
        %302 = vmatprep.subr.mxu0 0.0
        %303 = vmatpush1.msra.mxu0 0.0
        %304 = vmatprep.subr.mxu0 0.0
        %305 = vmatpush1.msra.mxu0 0.0
        %306 = vmatprep.subr.mxu0 0.0
        %307 = vmatpush1.msra.mxu0 0.0
        %308 = vmatprep.subr.mxu0 0.0
        %309 = vmatpush1.msra.mxu0 0.0
        %310 = vmatprep.subr.mxu0 0.0
        %311 = vmatpush1.msra.mxu0 0.0
        %312 = vmatprep.subr.mxu0 0.0
        %313 = vmatpush1.msra.mxu0 0.0
        %314 = vmatprep.subr.mxu0 0.0
        %315 = vmatpush1.msra.mxu0 0.0
        %316 = vmatprep.subr.mxu0 0.0
        %317 = vmatpush1.msra.mxu0 0.0
        %318 = vmatprep.subr.mxu0 0.0
        %319 = vmatpush1.msra.mxu0 0.0
        %320 = vmatprep.subr.mxu0 0.0
        %321 = vmatpush1.msra.mxu0 0.0
        %322 = vmatprep.subr.mxu0 0.0
        %323 = vmatpush1.msra.mxu0 0.0
        %324 = vmatprep.subr.mxu0 0.0
        %325 = vmatpush1.msra.mxu0 0.0
        %326 = vmatprep.subr.mxu0 0.0
        %327 = vmatpush1.msra.mxu0 0.0
        %328 = vmatprep.subr.mxu0 0.0
        %329 = vmatpush1.msra.mxu0 0.0
        %330 = vmatprep.subr.mxu0 0.0
        %331 = vmatpush1.msra.mxu0 0.0
        %332 = vmatprep.mubr.f32.mxu0 0.0
        %333 = vmatmul.mubr.f32.gmra.mrb[0].mxu0 %v266
        %v334 = vpop.f32.mrb[0].mxu0
        %v335 = vadd.f32 %v263, %v334
        %v336 = vpop.f32.mrb[0].mxu0
        %337 = vdwg.mxu0
        %v338 = vtanh.pop %v335
        %v339 = vlaneseq
        %v340 = vshrl.u32 %v339, 7
        %v341 = vsub.s32 0, %v340
        %v342 = vrot.slane %v249, %v341
        %343 = vmatprep.subr.mxu0 0.0
        %344 = vmatpush1.msra.mxu0 %v244
        %345 = vmatprep.subr.mxu0 0.0
        %346 = vmatpush1.msra.mxu0 %v245
        %347 = vmatprep.subr.mxu0 0.0
        %348 = vmatpush1.msra.mxu0 0.0
        %349 = vmatprep.subr.mxu0 0.0
        %350 = vmatpush1.msra.mxu0 0.0
        %351 = vmatprep.subr.mxu0 0.0
        %352 = vmatpush1.msra.mxu0 0.0
        %353 = vmatprep.subr.mxu0 0.0
        %354 = vmatpush1.msra.mxu0 0.0
        %355 = vmatprep.subr.mxu0 0.0
        %356 = vmatpush1.msra.mxu0 0.0
        %357 = vmatprep.subr.mxu0 0.0
        %358 = vmatpush1.msra.mxu0 0.0
        %359 = vmatprep.subr.mxu0 0.0
        %360 = vmatpush1.msra.mxu0 0.0
        %361 = vmatprep.subr.mxu0 0.0
        %362 = vmatpush1.msra.mxu0 0.0
        %363 = vmatprep.subr.mxu0 0.0
        %364 = vmatpush1.msra.mxu0 0.0
        %365 = vmatprep.subr.mxu0 0.0
        %366 = vmatpush1.msra.mxu0 0.0
        %367 = vmatprep.subr.mxu0 0.0
        %368 = vmatpush1.msra.mxu0 0.0
        %369 = vmatprep.subr.mxu0 0.0
        %370 = vmatpush1.msra.mxu0 0.0
        %371 = vmatprep.subr.mxu0 0.0
        %372 = vmatpush1.msra.mxu0 0.0
        %373 = vmatprep.subr.mxu0 0.0
        %374 = vmatpush1.msra.mxu0 0.0
        %375 = vmatprep.subr.mxu0 0.0
        %376 = vmatpush1.msra.mxu0 0.0
        %377 = vmatprep.subr.mxu0 0.0
        %378 = vmatpush1.msra.mxu0 0.0
        %379 = vmatprep.subr.mxu0 0.0
        %380 = vmatpush1.msra.mxu0 0.0
        %381 = vmatprep.subr.mxu0 0.0
        %382 = vmatpush1.msra.mxu0 0.0
        %383 = vmatprep.subr.mxu0 0.0
        %384 = vmatpush1.msra.mxu0 0.0
        %385 = vmatprep.subr.mxu0 0.0
        %386 = vmatpush1.msra.mxu0 0.0
        %387 = vmatprep.subr.mxu0 0.0
        %388 = vmatpush1.msra.mxu0 0.0
        %389 = vmatprep.subr.mxu0 0.0
        %390 = vmatpush1.msra.mxu0 0.0
        %391 = vmatprep.subr.mxu0 0.0
        %392 = vmatpush1.msra.mxu0 0.0
        %393 = vmatprep.subr.mxu0 0.0
        %394 = vmatpush1.msra.mxu0 0.0
        %395 = vmatprep.subr.mxu0 0.0
        %396 = vmatpush1.msra.mxu0 0.0
        %397 = vmatprep.subr.mxu0 0.0
        %398 = vmatpush1.msra.mxu0 0.0
        %399 = vmatprep.subr.mxu0 0.0
        %400 = vmatpush1.msra.mxu0 0.0
        %401 = vmatprep.subr.mxu0 0.0
        %402 = vmatpush1.msra.mxu0 0.0
        %403 = vmatprep.subr.mxu0 0.0
        %404 = vmatpush1.msra.mxu0 0.0
        %405 = vmatprep.subr.mxu0 0.0
        %406 = vmatpush1.msra.mxu0 0.0
        %407 = vmatprep.mubr.f32.mxu0 0.0
        %408 = vmatmul.mubr.f32.gmra.mrb[0].mxu0 %v266
        %v409 = vpop.f32.mrb[0].mxu0
        %v410 = vadd.f32 %v342, %v409
        %v411 = vpop.f32.mrb[0].mxu0
        %412 = vdwg.mxu0
        %v413 = vtanh.pop %v410
        %v415 = vsel %vm264, %v338, 0
        %417 = vmatprep.subr.mxu0 0.0
        %418 = vmatpush1.msra.mxu0 %v246
        %419 = vmatprep.subr.mxu0 0.0
        %420 = vmatpush1.msra.mxu0 %v247
        %421 = vmatprep.subr.mxu0 0.0
        %422 = vmatpush1.msra.mxu0 0.0
        %423 = vmatprep.subr.mxu0 0.0
        %424 = vmatpush1.msra.mxu0 0.0
        %425 = vmatprep.subr.mxu0 0.0
        %426 = vmatpush1.msra.mxu0 0.0
        %427 = vmatprep.subr.mxu0 0.0
        %428 = vmatpush1.msra.mxu0 0.0
        %429 = vmatprep.subr.mxu0 0.0
        %430 = vmatpush1.msra.mxu0 0.0
        %431 = vmatprep.subr.mxu0 0.0
        %432 = vmatpush1.msra.mxu0 0.0
        %433 = vmatprep.subr.mxu0 0.0
        %434 = vmatpush1.msra.mxu0 0.0
        %435 = vmatprep.subr.mxu0 0.0
        %436 = vmatpush1.msra.mxu0 0.0
        %437 = vmatprep.subr.mxu0 0.0
        %438 = vmatpush1.msra.mxu0 0.0
        %439 = vmatprep.subr.mxu0 0.0
        %440 = vmatpush1.msra.mxu0 0.0
        %441 = vmatprep.subr.mxu0 0.0
        %442 = vmatpush1.msra.mxu0 0.0
        %443 = vmatprep.subr.mxu0 0.0
        %444 = vmatpush1.msra.mxu0 0.0
        %445 = vmatprep.subr.mxu0 0.0
        %446 = vmatpush1.msra.mxu0 0.0
        %447 = vmatprep.subr.mxu0 0.0
        %448 = vmatpush1.msra.mxu0 0.0
        %449 = vmatprep.subr.mxu0 0.0
        %450 = vmatpush1.msra.mxu0 0.0
        %451 = vmatprep.subr.mxu0 0.0
        %452 = vmatpush1.msra.mxu0 0.0
        %453 = vmatprep.subr.mxu0 0.0
        %454 = vmatpush1.msra.mxu0 0.0
        %455 = vmatprep.subr.mxu0 0.0
        %456 = vmatpush1.msra.mxu0 0.0
        %457 = vmatprep.subr.mxu0 0.0
        %458 = vmatpush1.msra.mxu0 0.0
        %459 = vmatprep.subr.mxu0 0.0
        %460 = vmatpush1.msra.mxu0 0.0
        %461 = vmatprep.subr.mxu0 0.0
        %462 = vmatpush1.msra.mxu0 0.0
        %463 = vmatprep.subr.mxu0 0.0
        %464 = vmatpush1.msra.mxu0 0.0
        %465 = vmatprep.subr.mxu0 0.0
        %466 = vmatpush1.msra.mxu0 0.0
        %467 = vmatprep.subr.mxu0 0.0
        %468 = vmatpush1.msra.mxu0 0.0
        %469 = vmatprep.subr.mxu0 0.0
        %470 = vmatpush1.msra.mxu0 0.0
        %471 = vmatprep.subr.mxu0 0.0
        %472 = vmatpush1.msra.mxu0 0.0
        %473 = vmatprep.subr.mxu0 0.0
        %474 = vmatpush1.msra.mxu0 0.0
        %475 = vmatprep.subr.mxu0 0.0
        %476 = vmatpush1.msra.mxu0 0.0
        %477 = vmatprep.subr.mxu0 0.0
        %478 = vmatpush1.msra.mxu0 0.0
        %479 = vmatprep.subr.mxu0 0.0
        %480 = vmatpush1.msra.mxu0 0.0
        %481 = vmatprep.mubr.f32.mxu0 0.0
        %482 = vmatmul.mubr.f32.gmra.mrb[0].mxu0 %v415
        %v483 = vpop.f32.mrb[0].mxu0
        %v484 = vadd.f32 0.0, %v483
        %v485 = vpop.f32.mrb[0].mxu0
        %486 = vdwg.mxu0
        %v488 = vsel %vm264, %v484, 0
        %v491 = vsel %vm264, %v413, 0
        %493 = vmatprep.subr.mxu0 0.0
        %494 = vmatpush1.xpose.msra.mxu0 %v491
        %495 = vmatprep.subr.mxu0 0.0
        %496 = vmatpush1.xpose.msra.mxu0 0.0
        %497 = vmatprep.subr.mxu0 0.0
        %498 = vmatpush1.xpose.msra.mxu0 0.0
        %499 = vmatprep.subr.mxu0 0.0
        %500 = vmatpush1.xpose.msra.mxu0 0.0
        %501 = vmatprep.subr.mxu0 0.0
        %502 = vmatpush1.xpose.msra.mxu0 0.0
        %503 = vmatprep.subr.mxu0 0.0
        %504 = vmatpush1.xpose.msra.mxu0 0.0
        %505 = vmatprep.subr.mxu0 0.0
        %506 = vmatpush1.xpose.msra.mxu0 0.0
        %507 = vmatprep.subr.mxu0 0.0
        %508 = vmatpush1.xpose.msra.mxu0 0.0
        %509 = vmatprep.subr.mxu0 0.0
        %510 = vmatpush1.xpose.msra.mxu0 0.0
        %511 = vmatprep.subr.mxu0 0.0
        %512 = vmatpush1.xpose.msra.mxu0 0.0
        %513 = vmatprep.subr.mxu0 0.0
        %514 = vmatpush1.xpose.msra.mxu0 0.0
        %515 = vmatprep.subr.mxu0 0.0
        %516 = vmatpush1.xpose.msra.mxu0 0.0
        %517 = vmatprep.subr.mxu0 0.0
        %518 = vmatpush1.xpose.msra.mxu0 0.0
        %519 = vmatprep.subr.mxu0 0.0
        %520 = vmatpush1.xpose.msra.mxu0 0.0
        %521 = vmatprep.subr.mxu0 0.0
        %522 = vmatpush1.xpose.msra.mxu0 0.0
        %523 = vmatprep.subr.mxu0 0.0
        %524 = vmatpush1.xpose.msra.mxu0 0.0
        %525 = vmatprep.subr.mxu0 0.0
        %526 = vmatpush1.xpose.msra.mxu0 0.0
        %527 = vmatprep.subr.mxu0 0.0
        %528 = vmatpush1.xpose.msra.mxu0 0.0
        %529 = vmatprep.subr.mxu0 0.0
        %530 = vmatpush1.xpose.msra.mxu0 0.0
        %531 = vmatprep.subr.mxu0 0.0
        %532 = vmatpush1.xpose.msra.mxu0 0.0
        %533 = vmatprep.subr.mxu0 0.0
        %534 = vmatpush1.xpose.msra.mxu0 0.0
        %535 = vmatprep.subr.mxu0 0.0
        %536 = vmatpush1.xpose.msra.mxu0 0.0
        %537 = vmatprep.subr.mxu0 0.0
        %538 = vmatpush1.xpose.msra.mxu0 0.0
        %539 = vmatprep.subr.mxu0 0.0
        %540 = vmatpush1.xpose.msra.mxu0 0.0
        %541 = vmatprep.subr.mxu0 0.0
        %542 = vmatpush1.xpose.msra.mxu0 0.0
        %543 = vmatprep.subr.mxu0 0.0
        %544 = vmatpush1.xpose.msra.mxu0 0.0
        %545 = vmatprep.subr.mxu0 0.0
        %546 = vmatpush1.xpose.msra.mxu0 0.0
        %547 = vmatprep.subr.mxu0 0.0
        %548 = vmatpush1.xpose.msra.mxu0 0.0
        %549 = vmatprep.subr.mxu0 0.0
        %550 = vmatpush1.xpose.msra.mxu0 0.0
        %551 = vmatprep.subr.mxu0 0.0
        %552 = vmatpush1.xpose.msra.mxu0 0.0
        %553 = vmatprep.subr.mxu0 0.0
        %554 = vmatpush1.xpose.msra.mxu0 0.0
        %555 = vmatprep.subr.mxu0 0.0
        %556 = vmatpush1.xpose.msra.mxu0 0.0
        %557 = vmatprep.mubr.f32.mxu0 0.0
        %558 = vmatmul.mubr.f32.gmra.mrb[0].mxu0 %v488
        %v559 = vpop.f32.mrb[0].mxu0
        %v560 = vadd.f32 0.0, %v559
        %v561 = vpop.f32.mrb[0].mxu0
        %562 = vdwg.mxu0
        %v563 = vmul.f32 %v560, 1.442695
        %v564 = vpow.pop %v563
        %v565 = vsub.f32 1.0, %v259
        %v566 = vmul.f32 %v564, %v565
        %567 = vxpose.xlu0.b32.start [1/16] %v566, 128
        %568 = vxpose.xlu0.b32.cont [2/16] 0.0, 128
        %569 = vxpose.xlu0.b32.cont [3/16] 0.0, 128
        %570 = vxpose.xlu0.b32.cont [4/16] 0.0, 128
        %571 = vxpose.xlu0.b32.cont [5/16] 0.0, 128
        %572 = vxpose.xlu0.b32.cont [6/16] 0.0, 128
        %573 = vxpose.xlu0.b32.cont [7/16] 0.0, 128
        %574 = vxpose.xlu0.b32.cont [8/16] 0.0, 128
        %575 = vxpose.xlu0.b32.cont [9/16] 0.0, 128
        %576 = vxpose.xlu0.b32.cont [10/16] 0.0, 128
        %577 = vxpose.xlu0.b32.cont [11/16] 0.0, 128
        %578 = vxpose.xlu0.b32.cont [12/16] 0.0, 128
        %579 = vxpose.xlu0.b32.cont [13/16] 0.0, 128
        %580 = vxpose.xlu0.b32.cont [14/16] 0.0, 128
        %581 = vxpose.xlu0.b32.cont [15/16] 0.0, 128
        %582 = vxpose.xlu0.b32.end [16/16] 0.0, 128
        %v583 = vpop.trf.xlu0
        %v584 = vpop.trf.xlu0
        %v585 = vpop.trf.xlu0
        %v586 = vpop.trf.xlu0
        %v587 = vpop.trf.xlu0
        %v588 = vpop.trf.xlu0
        %v589 = vpop.trf.xlu0
        %v590 = vpop.trf.xlu0
        %v591 = vpop.trf.xlu0
        %v592 = vpop.trf.xlu0
        %v593 = vpop.trf.xlu0
        %v594 = vpop.trf.xlu0
        %v595 = vpop.trf.xlu0
        %v596 = vpop.trf.xlu0
        %v597 = vpop.trf.xlu0
        %v598 = vpop.trf.xlu0
        %v600 = vsel %vm236, %v583, 0
        %602 = vmatprep.subr.mxu0 0.0
        %603 = vmatpush1.msra.mxu0 %v259
        %604 = vmatprep.subr.mxu0 0.0
        %605 = vmatpush1.msra.mxu0 0.0
        %606 = vmatprep.subr.mxu0 0.0
        %607 = vmatpush1.msra.mxu0 0.0
        %608 = vmatprep.subr.mxu0 0.0
        %609 = vmatpush1.msra.mxu0 0.0
        %610 = vmatprep.subr.mxu0 0.0
        %611 = vmatpush1.msra.mxu0 0.0
        %612 = vmatprep.subr.mxu0 0.0
        %613 = vmatpush1.msra.mxu0 0.0
        %614 = vmatprep.subr.mxu0 0.0
        %615 = vmatpush1.msra.mxu0 0.0
        %616 = vmatprep.subr.mxu0 0.0
        %617 = vmatpush1.msra.mxu0 0.0
        %618 = vmatprep.subr.mxu0 0.0
        %619 = vmatpush1.msra.mxu0 0.0
        %620 = vmatprep.subr.mxu0 0.0
        %621 = vmatpush1.msra.mxu0 0.0
        %622 = vmatprep.subr.mxu0 0.0
        %623 = vmatpush1.msra.mxu0 0.0
        %624 = vmatprep.subr.mxu0 0.0
        %625 = vmatpush1.msra.mxu0 0.0
        %626 = vmatprep.subr.mxu0 0.0
        %627 = vmatpush1.msra.mxu0 0.0
        %628 = vmatprep.subr.mxu0 0.0
        %629 = vmatpush1.msra.mxu0 0.0
        %630 = vmatprep.subr.mxu0 0.0
        %631 = vmatpush1.msra.mxu0 0.0
        %632 = vmatprep.subr.mxu0 0.0
        %633 = vmatpush1.msra.mxu0 0.0
        %634 = vmatprep.subr.mxu0 0.0
        %635 = vmatpush1.msra.mxu0 0.0
        %636 = vmatprep.subr.mxu0 0.0
        %637 = vmatpush1.msra.mxu0 0.0
        %638 = vmatprep.subr.mxu0 0.0
        %639 = vmatpush1.msra.mxu0 0.0
        %640 = vmatprep.subr.mxu0 0.0
        %641 = vmatpush1.msra.mxu0 0.0
        %642 = vmatprep.subr.mxu0 0.0
        %643 = vmatpush1.msra.mxu0 0.0
        %644 = vmatprep.subr.mxu0 0.0
        %645 = vmatpush1.msra.mxu0 0.0
        %646 = vmatprep.subr.mxu0 0.0
        %647 = vmatpush1.msra.mxu0 0.0
        %648 = vmatprep.subr.mxu0 0.0
        %649 = vmatpush1.msra.mxu0 0.0
        %650 = vmatprep.subr.mxu0 0.0
        %651 = vmatpush1.msra.mxu0 0.0
        %652 = vmatprep.subr.mxu0 0.0
        %653 = vmatpush1.msra.mxu0 0.0
        %654 = vmatprep.subr.mxu0 0.0
        %655 = vmatpush1.msra.mxu0 0.0
        %656 = vmatprep.subr.mxu0 0.0
        %657 = vmatpush1.msra.mxu0 0.0
        %658 = vmatprep.subr.mxu0 0.0
        %659 = vmatpush1.msra.mxu0 0.0
        %660 = vmatprep.subr.mxu0 0.0
        %661 = vmatpush1.msra.mxu0 0.0
        %662 = vmatprep.subr.mxu0 0.0
        %663 = vmatpush1.msra.mxu0 0.0
        %664 = vmatprep.subr.mxu0 0.0
        %665 = vmatpush1.msra.mxu0 0.0
        %666 = vmatprep.mubr.f32.mxu0 0.0
        %667 = vmatmul.mubr.f32.gmra.mrb[0].mxu0 %v600
        %v668 = vpop.f32.mrb[0].mxu0
        %v669 = vadd.f32 0.0, %v668
        %v670 = vpop.f32.mrb[0].mxu0
        %671 = vdwg.mxu0
        %v672 = vlaneseq
        %v673 = vshrl.u32 %v672, 7
        %v674 = vsub.s32 0, %v673
        %v675 = vrot.slane %v252, %v674
        %v676 = vmul.f32 %v241, %v675
        %v677 = vsel %vm264, %v676, 0.0
        %678 = vadd.xlane.f32.xlu0 %v677
        %v679 = vpop.xlane.xlu0 %678
        %v680 = vmul.f32 %v679, 1.442695
        %v681 = vpow.pop %v680
        %v683 = vsel %vm264, %v252, 0
        %685 = vmatprep.subr.mxu0 0.0
        %686 = vmatpush1.xpose.msra.mxu0 %v266
        %687 = vmatprep.subr.mxu0 0.0
        %688 = vmatpush1.xpose.msra.mxu0 0.0
        %689 = vmatprep.subr.mxu0 0.0
        %690 = vmatpush1.xpose.msra.mxu0 0.0
        %691 = vmatprep.subr.mxu0 0.0
        %692 = vmatpush1.xpose.msra.mxu0 0.0
        %693 = vmatprep.subr.mxu0 0.0
        %694 = vmatpush1.xpose.msra.mxu0 0.0
        %695 = vmatprep.subr.mxu0 0.0
        %696 = vmatpush1.xpose.msra.mxu0 0.0
        %697 = vmatprep.subr.mxu0 0.0
        %698 = vmatpush1.xpose.msra.mxu0 0.0
        %699 = vmatprep.subr.mxu0 0.0
        %700 = vmatpush1.xpose.msra.mxu0 0.0
        %701 = vmatprep.subr.mxu0 0.0
        %702 = vmatpush1.xpose.msra.mxu0 0.0
        %703 = vmatprep.subr.mxu0 0.0
        %704 = vmatpush1.xpose.msra.mxu0 0.0
        %705 = vmatprep.subr.mxu0 0.0
        %706 = vmatpush1.xpose.msra.mxu0 0.0
        %707 = vmatprep.subr.mxu0 0.0
        %708 = vmatpush1.xpose.msra.mxu0 0.0
        %709 = vmatprep.subr.mxu0 0.0
        %710 = vmatpush1.xpose.msra.mxu0 0.0
        %711 = vmatprep.subr.mxu0 0.0
        %712 = vmatpush1.xpose.msra.mxu0 0.0
        %713 = vmatprep.subr.mxu0 0.0
        %714 = vmatpush1.xpose.msra.mxu0 0.0
        %715 = vmatprep.subr.mxu0 0.0
        %716 = vmatpush1.xpose.msra.mxu0 0.0
        %717 = vmatprep.subr.mxu0 0.0
        %718 = vmatpush1.xpose.msra.mxu0 0.0
        %719 = vmatprep.subr.mxu0 0.0
        %720 = vmatpush1.xpose.msra.mxu0 0.0
        %721 = vmatprep.subr.mxu0 0.0
        %722 = vmatpush1.xpose.msra.mxu0 0.0
        %723 = vmatprep.subr.mxu0 0.0
        %724 = vmatpush1.xpose.msra.mxu0 0.0
        %725 = vmatprep.subr.mxu0 0.0
        %726 = vmatpush1.xpose.msra.mxu0 0.0
        %727 = vmatprep.subr.mxu0 0.0
        %728 = vmatpush1.xpose.msra.mxu0 0.0
        %729 = vmatprep.subr.mxu0 0.0
        %730 = vmatpush1.xpose.msra.mxu0 0.0
        %731 = vmatprep.subr.mxu0 0.0
        %732 = vmatpush1.xpose.msra.mxu0 0.0
        %733 = vmatprep.subr.mxu0 0.0
        %734 = vmatpush1.xpose.msra.mxu0 0.0
        %735 = vmatprep.subr.mxu0 0.0
        %736 = vmatpush1.xpose.msra.mxu0 0.0
        %737 = vmatprep.subr.mxu0 0.0
        %738 = vmatpush1.xpose.msra.mxu0 0.0
        %739 = vmatprep.subr.mxu0 0.0
        %740 = vmatpush1.xpose.msra.mxu0 0.0
        %741 = vmatprep.subr.mxu0 0.0
        %742 = vmatpush1.xpose.msra.mxu0 0.0
        %743 = vmatprep.subr.mxu0 0.0
        %744 = vmatpush1.xpose.msra.mxu0 0.0
        %745 = vmatprep.subr.mxu0 0.0
        %746 = vmatpush1.xpose.msra.mxu0 0.0
        %747 = vmatprep.subr.mxu0 0.0
        %748 = vmatpush1.xpose.msra.mxu0 0.0
        %749 = vmatprep.mubr.f32.mxu0 0.0
        %750 = vmatmul.mubr.f32.gmra.mrb[0].mxu0 %v683
        %v751 = vpop.f32.mrb[0].mxu0
        %v752 = vadd.f32 0.0, %v751
        %v753 = vpop.f32.mrb[0].mxu0
        %754 = vdwg.mxu0
        %v755 = vmul.f32 %v752, 1.442695
        %v756 = vpow.pop %v755
        %v757 = vsel %vm236, %v566, 0.0
        %v758 = vrot.slane %v757, 4
        %v759 = vadd.f32 %v757, %v758
        %v760 = vrot.slane %v759, 2
        %v761 = vadd.f32 %v759, %v760
        %v762 = vrot.slane %v761, 1
        %v763 = vadd.f32 %v761, %v762
        %v764 = vmul.f32 %v259, %v763
        %v765 = vsub.f32 %v764, %v566
        %vm766 = vcmp.eq.s32.totalorder %v254, 0
        %v767 = vlaneseq
        %v768 = vshrl.u32 %v767, 7
        %v769 = vsub.s32 0, %v768
        %v770 = vrot.slane %v756, %v769
        %v771 = vsel %vm766, %v770, %v765
        %772 = vst.msk [vmem:[#allocation2] sm:$0xff] %vm236, %v771
        %773 = vst.msk [vmem:[#allocation3] sm:$0xff] %vm236, %v259
        %v774 = vld [vmem:[#allocation2] sm:$0x1]
        %v775 = vld [vmem:[#allocation3] sm:$0x1]
        %vm776 = vcmp.eq.f32.partialorder %v774, 0.0
        %v777 = vsel %vm776, 1e-30, %v774
        %v778 = vrcp.pop %v777
        %v779 = vmul.f32 1.0, %v778
        %781 = vset.pattern.permute.xlu0 0
        %782 = vperm.xlu0 %781, %v779
        %v783 = vpop.permute.xlu0 %782
        %v785 = vmul.f32 %v774, %v783
        %v786 = vmul.f32 %v775, %v783
        %v787 = vld [vmem:[#allocation2] sm:$0xff]
        %v788 = vld [vmem:[#allocation3] sm:$0xff]
        %v789 = vsel %vm766, 0.0, %v787
        %791 = vset.pattern.permute.xlu0 0
        %792 = vperm.xlu0 %791, %v789
        %v793 = vpop.permute.xlu0 %792
        %v795 = vlaneseq
        %v796 = vshrl.u32 %v795, 7
        %v797 = vsub.s32 0, %v796
        %v798 = vrot.slane %v785, %v797
        %v799 = vmul.f32 %v793, %v798
        %v800 = vsub.f32 %v787, %v799
        %801 = vst.msk [vmem:[#allocation2] sm:$0xff] %vm236, %v800
        %v802 = vlaneseq
        %v803 = vshrl.u32 %v802, 7
        %v804 = vsub.s32 0, %v803
        %v805 = vrot.slane %v786, %v804
        %v806 = vmul.f32 %v793, %v805
        %v807 = vsub.f32 %v788, %v806
        %808 = vst.msk [vmem:[#allocation3] sm:$0xff] %vm236, %v807
        %vm809 = vcmask 57344
        %810 = vst.msk [vmem:[#allocation2] sm:$0x1] %vm809, %v785
        %811 = vst.msk [vmem:[#allocation3] sm:$0x1] %vm809, %v786
        %v812 = vld [vmem:[#allocation2 + $0x1] sm:$0x1]
        %v813 = vld [vmem:[#allocation3 + $0x1] sm:$0x1]
        %vm814 = vcmp.eq.f32.partialorder %v812, 0.0
        %v815 = vsel %vm814, 1e-30, %v812
        %v816 = vrcp.pop %v815
        %v817 = vmul.f32 1.0, %v816
        %819 = vset.pattern.permute.xlu0 1
        %820 = vperm.xlu0 %819, %v817
        %v821 = vpop.permute.xlu0 %820
        %v823 = vmul.f32 %v812, %v821
        %v824 = vmul.f32 %v813, %v821
        %v825 = vld [vmem:[#allocation2] sm:$0xff]
        %v826 = vld [vmem:[#allocation3] sm:$0xff]
        %vm827 = vcmp.eq.s32.totalorder %v254, 1
        %v828 = vsel %vm827, 0.0, %v825
        %830 = vset.pattern.permute.xlu0 1
        %831 = vperm.xlu0 %830, %v828
        %v832 = vpop.permute.xlu0 %831
        %v834 = vlaneseq
        %v835 = vshrl.u32 %v834, 7
        %v836 = vsub.s32 0, %v835
        %v837 = vrot.slane %v823, %v836
        %v838 = vmul.f32 %v832, %v837
        %v839 = vsub.f32 %v825, %v838
        %840 = vst.msk [vmem:[#allocation2] sm:$0xff] %vm236, %v839
        %v841 = vlaneseq
        %v842 = vshrl.u32 %v841, 7
        %v843 = vsub.s32 0, %v842
        %v844 = vrot.slane %v824, %v843
        %v845 = vmul.f32 %v832, %v844
        %v846 = vsub.f32 %v826, %v845
        %847 = vst.msk [vmem:[#allocation3] sm:$0xff] %vm236, %v846
        %848 = vst.msk [vmem:[#allocation2 + $0x1] sm:$0x1] %vm809, %v823
        %849 = vst.msk [vmem:[#allocation3 + $0x1] sm:$0x1] %vm809, %v824
        %v850 = vld [vmem:[#allocation2 + $0x2] sm:$0x1]
        %v851 = vld [vmem:[#allocation3 + $0x2] sm:$0x1]
        %vm852 = vcmp.eq.f32.partialorder %v850, 0.0
        %v853 = vsel %vm852, 1e-30, %v850
        %v854 = vrcp.pop %v853
        %v855 = vmul.f32 1.0, %v854
        %857 = vset.pattern.permute.xlu0 2
        %858 = vperm.xlu0 %857, %v855
        %v859 = vpop.permute.xlu0 %858
        %v861 = vmul.f32 %v850, %v859
        %v862 = vmul.f32 %v851, %v859
        %v863 = vld [vmem:[#allocation2] sm:$0xff]
        %v864 = vld [vmem:[#allocation3] sm:$0xff]
        %vm865 = vcmp.eq.s32.totalorder %v254, 2
        %v866 = vsel %vm865, 0.0, %v863
        %868 = vset.pattern.permute.xlu0 2
        %869 = vperm.xlu0 %868, %v866
        %v870 = vpop.permute.xlu0 %869
        %v872 = vlaneseq
        %v873 = vshrl.u32 %v872, 7
        %v874 = vsub.s32 0, %v873
        %v875 = vrot.slane %v861, %v874
        %v876 = vmul.f32 %v870, %v875
        %v877 = vsub.f32 %v863, %v876
        %878 = vst.msk [vmem:[#allocation2] sm:$0xff] %vm236, %v877
        %v879 = vlaneseq
        %v880 = vshrl.u32 %v879, 7
        %v881 = vsub.s32 0, %v880
        %v882 = vrot.slane %v862, %v881
        %v883 = vmul.f32 %v870, %v882
        %v884 = vsub.f32 %v864, %v883
        %885 = vst.msk [vmem:[#allocation3] sm:$0xff] %vm236, %v884
        %886 = vst.msk [vmem:[#allocation2 + $0x2] sm:$0x1] %vm809, %v861
        %887 = vst.msk [vmem:[#allocation3 + $0x2] sm:$0x1] %vm809, %v862
        %v888 = vld [vmem:[#allocation2 + $0x3] sm:$0x1]
        %v889 = vld [vmem:[#allocation3 + $0x3] sm:$0x1]
        %vm890 = vcmp.eq.f32.partialorder %v888, 0.0
        %v891 = vsel %vm890, 1e-30, %v888
        %v892 = vrcp.pop %v891
        %v893 = vmul.f32 1.0, %v892
        %895 = vset.pattern.permute.xlu0 3
        %896 = vperm.xlu0 %895, %v893
        %v897 = vpop.permute.xlu0 %896
        %v899 = vmul.f32 %v888, %v897
        %v900 = vmul.f32 %v889, %v897
        %v901 = vld [vmem:[#allocation2] sm:$0xff]
        %v902 = vld [vmem:[#allocation3] sm:$0xff]
        %vm903 = vcmp.eq.s32.totalorder %v254, 3
        %v904 = vsel %vm903, 0.0, %v901
        %906 = vset.pattern.permute.xlu0 3
        %907 = vperm.xlu0 %906, %v904
        %v908 = vpop.permute.xlu0 %907
        %v910 = vlaneseq
        %v911 = vshrl.u32 %v910, 7
        %v912 = vsub.s32 0, %v911
        %v913 = vrot.slane %v899, %v912
        %v914 = vmul.f32 %v908, %v913
        %v915 = vsub.f32 %v901, %v914
        %916 = vst.msk [vmem:[#allocation2] sm:$0xff] %vm236, %v915
        %v917 = vlaneseq
        %v918 = vshrl.u32 %v917, 7
        %v919 = vsub.s32 0, %v918
        %v920 = vrot.slane %v900, %v919
        %v921 = vmul.f32 %v908, %v920
        %v922 = vsub.f32 %v902, %v921
        %923 = vst.msk [vmem:[#allocation3] sm:$0xff] %vm236, %v922
        %924 = vst.msk [vmem:[#allocation2 + $0x3] sm:$0x1] %vm809, %v899
        %925 = vst.msk [vmem:[#allocation3 + $0x3] sm:$0x1] %vm809, %v900
        %v926 = vld [vmem:[#allocation2 + $0x4] sm:$0x1]
        %v927 = vld [vmem:[#allocation3 + $0x4] sm:$0x1]
        %vm928 = vcmp.eq.f32.partialorder %v926, 0.0
        %v929 = vsel %vm928, 1e-30, %v926
        %v930 = vrcp.pop %v929
        %v931 = vmul.f32 1.0, %v930
        %933 = vset.pattern.permute.xlu0 4
        %934 = vperm.xlu0 %933, %v931
        %v935 = vpop.permute.xlu0 %934
        %v937 = vmul.f32 %v926, %v935
        %v938 = vmul.f32 %v927, %v935
        %v939 = vld [vmem:[#allocation2] sm:$0xff]
        %v940 = vld [vmem:[#allocation3] sm:$0xff]
        %vm941 = vcmp.eq.s32.totalorder %v254, 4
        %v942 = vsel %vm941, 0.0, %v939
        %944 = vset.pattern.permute.xlu0 4
        %945 = vperm.xlu0 %944, %v942
        %v946 = vpop.permute.xlu0 %945
        %v948 = vlaneseq
        %v949 = vshrl.u32 %v948, 7
        %v950 = vsub.s32 0, %v949
        %v951 = vrot.slane %v937, %v950
        %v952 = vmul.f32 %v946, %v951
        %v953 = vsub.f32 %v939, %v952
        %954 = vst.msk [vmem:[#allocation2] sm:$0xff] %vm236, %v953
        %v955 = vlaneseq
        %v956 = vshrl.u32 %v955, 7
        %v957 = vsub.s32 0, %v956
        %v958 = vrot.slane %v938, %v957
        %v959 = vmul.f32 %v946, %v958
        %v960 = vsub.f32 %v940, %v959
        %961 = vst.msk [vmem:[#allocation3] sm:$0xff] %vm236, %v960
        %962 = vst.msk [vmem:[#allocation2 + $0x4] sm:$0x1] %vm809, %v937
        %963 = vst.msk [vmem:[#allocation3 + $0x4] sm:$0x1] %vm809, %v938
        %v964 = vld [vmem:[#allocation2 + $0x5] sm:$0x1]
        %v965 = vld [vmem:[#allocation3 + $0x5] sm:$0x1]
        %vm966 = vcmp.eq.f32.partialorder %v964, 0.0
        %v967 = vsel %vm966, 1e-30, %v964
        %v968 = vrcp.pop %v967
        %v969 = vmul.f32 1.0, %v968
        %971 = vset.pattern.permute.xlu0 5
        %972 = vperm.xlu0 %971, %v969
        %v973 = vpop.permute.xlu0 %972
        %v975 = vmul.f32 %v964, %v973
        %v976 = vmul.f32 %v965, %v973
        %v977 = vld [vmem:[#allocation2] sm:$0xff]
        %v978 = vld [vmem:[#allocation3] sm:$0xff]
        %vm979 = vcmp.eq.s32.totalorder %v254, 5
        %v980 = vsel %vm979, 0.0, %v977
        %982 = vset.pattern.permute.xlu0 5
        %983 = vperm.xlu0 %982, %v980
        %v984 = vpop.permute.xlu0 %983
        %v986 = vlaneseq
        %v987 = vshrl.u32 %v986, 7
        %v988 = vsub.s32 0, %v987
        %v989 = vrot.slane %v975, %v988
        %v990 = vmul.f32 %v984, %v989
        %v991 = vsub.f32 %v977, %v990
        %992 = vst.msk [vmem:[#allocation2] sm:$0xff] %vm236, %v991
        %v993 = vlaneseq
        %v994 = vshrl.u32 %v993, 7
        %v995 = vsub.s32 0, %v994
        %v996 = vrot.slane %v976, %v995
        %v997 = vmul.f32 %v984, %v996
        %v998 = vsub.f32 %v978, %v997
        %999 = vst.msk [vmem:[#allocation3] sm:$0xff] %vm236, %v998
        %1000 = vst.msk [vmem:[#allocation2 + $0x5] sm:$0x1] %vm809, %v975
        %1001 = vst.msk [vmem:[#allocation3 + $0x5] sm:$0x1] %vm809, %v976
        %v1002 = vld [vmem:[#allocation2 + $0x6] sm:$0x1]
        %v1003 = vld [vmem:[#allocation3 + $0x6] sm:$0x1]
        %vm1004 = vcmp.eq.f32.partialorder %v1002, 0.0
        %v1005 = vsel %vm1004, 1e-30, %v1002
        %v1006 = vrcp.pop %v1005
        %v1007 = vmul.f32 1.0, %v1006
        %1009 = vset.pattern.permute.xlu0 6
        %1010 = vperm.xlu0 %1009, %v1007
        %v1011 = vpop.permute.xlu0 %1010
        %v1013 = vmul.f32 %v1002, %v1011
        %v1014 = vmul.f32 %v1003, %v1011
        %v1015 = vld [vmem:[#allocation2] sm:$0xff]
        %v1016 = vld [vmem:[#allocation3] sm:$0xff]
        %vm1017 = vcmp.eq.s32.totalorder %v254, 6
        %v1018 = vsel %vm1017, 0.0, %v1015
        %1020 = vset.pattern.permute.xlu0 6
        %1021 = vperm.xlu0 %1020, %v1018
        %v1022 = vpop.permute.xlu0 %1021
        %v1024 = vlaneseq
        %v1025 = vshrl.u32 %v1024, 7
        %v1026 = vsub.s32 0, %v1025
        %v1027 = vrot.slane %v1013, %v1026
        %v1028 = vmul.f32 %v1022, %v1027
        %v1029 = vsub.f32 %v1015, %v1028
        %1030 = vst.msk [vmem:[#allocation2] sm:$0xff] %vm236, %v1029
        %v1031 = vlaneseq
        %v1032 = vshrl.u32 %v1031, 7
        %v1033 = vsub.s32 0, %v1032
        %v1034 = vrot.slane %v1014, %v1033
        %v1035 = vmul.f32 %v1022, %v1034
        %v1036 = vsub.f32 %v1016, %v1035
        %1037 = vst.msk [vmem:[#allocation3] sm:$0xff] %vm236, %v1036
        %1038 = vst.msk [vmem:[#allocation2 + $0x6] sm:$0x1] %vm809, %v1013
        %1039 = vst.msk [vmem:[#allocation3 + $0x6] sm:$0x1] %vm809, %v1014
        %v1040 = vld [vmem:[#allocation2 + $0x7] sm:$0x1]
        %v1041 = vld [vmem:[#allocation3 + $0x7] sm:$0x1]
        %vm1042 = vcmp.eq.f32.partialorder %v1040, 0.0
        %v1043 = vsel %vm1042, 1e-30, %v1040
        %v1044 = vrcp.pop %v1043
        %v1045 = vmul.f32 1.0, %v1044
        %1047 = vset.pattern.permute.xlu0 7
        %1048 = vperm.xlu0 %1047, %v1045
        %v1049 = vpop.permute.xlu0 %1048
        %v1051 = vmul.f32 %v1040, %v1049
        %v1052 = vmul.f32 %v1041, %v1049
        %v1053 = vld [vmem:[#allocation2] sm:$0xff]
        %v1054 = vld [vmem:[#allocation3] sm:$0xff]
        %vm1055 = vcmp.eq.s32.totalorder %v254, 7
        %v1056 = vsel %vm1055, 0.0, %v1053
        %1058 = vset.pattern.permute.xlu0 7
        %1059 = vperm.xlu0 %1058, %v1056
        %v1060 = vpop.permute.xlu0 %1059
        %v1062 = vlaneseq
        %v1063 = vshrl.u32 %v1062, 7
        %v1064 = vsub.s32 0, %v1063
        %v1065 = vrot.slane %v1051, %v1064
        %v1066 = vmul.f32 %v1060, %v1065
        %v1067 = vsub.f32 %v1053, %v1066
        %1068 = vst.msk [vmem:[#allocation2] sm:$0xff] %vm236, %v1067
        %v1069 = vlaneseq
        %v1070 = vshrl.u32 %v1069, 7
        %v1071 = vsub.s32 0, %v1070
        %v1072 = vrot.slane %v1052, %v1071
        %v1073 = vmul.f32 %v1060, %v1072
        %v1074 = vsub.f32 %v1054, %v1073
        %1075 = vst.msk [vmem:[#allocation3] sm:$0xff] %vm236, %v1074
        %1076 = vst.msk [vmem:[#allocation2 + $0x7] sm:$0x1] %vm809, %v1051
        %1077 = vst.msk [vmem:[#allocation3 + $0x7] sm:$0x1] %vm809, %v1052
        %v1078 = vld [vmem:[#allocation3] sm:$0xff]
        %v1079 = vmul.f32 %v1078, %v259
        %v1080 = vsel %vm236, %v1079, 0.0
        %1081 = vadd.xlane.f32.xlu0 %v1080
        %v1082 = vpop.xlane.xlu0 %1081
        %v1083 = vmul.f32 %v681, %v1078
        %v1084 = vmul.f32 %v669, %v1082
        %v1085 = vsel %vm766, 0.0, %v1084
        %vm1086 = vcmp.eq.s32.totalorder %v256, 0
        %v1087 = vmul.f32 %v669, %v1078
        %v1088 = vsel %vm1086, 0.0, %v1087
        %v1089 = vsub.f32 %v1085, %v1088
        %1091 = vset.pattern.permute.xlu0 0
        %1092 = vperm.xlu0 %1091, %v1083
        %v1093 = vpop.permute.xlu0 %1092
        %v1095 = vlaneseq
        %v1096 = vshrl.u32 %v1095, 7
        %v1097 = vsub.s32 0, %v1096
        %v1098 = vrot.slane %v251, %v1097
        %v1099 = vmul.f32 %v1093, %v1098
        %v1101 = vsel %vm236, %v1089, 0
        %1103 = vmatprep.subr.mxu0 0.0
        %1104 = vmatpush1.msra.mxu0 %v237
        %1105 = vmatprep.subr.mxu0 0.0
        %1106 = vmatpush1.msra.mxu0 0.0
        %1107 = vmatprep.subr.mxu0 0.0
        %1108 = vmatpush1.msra.mxu0 0.0
        %1109 = vmatprep.subr.mxu0 0.0
        %1110 = vmatpush1.msra.mxu0 0.0
        %1111 = vmatprep.subr.mxu0 0.0
        %1112 = vmatpush1.msra.mxu0 0.0
        %1113 = vmatprep.subr.mxu0 0.0
        %1114 = vmatpush1.msra.mxu0 0.0
        %1115 = vmatprep.subr.mxu0 0.0
        %1116 = vmatpush1.msra.mxu0 0.0
        %1117 = vmatprep.subr.mxu0 0.0
        %1118 = vmatpush1.msra.mxu0 0.0
        %1119 = vmatprep.subr.mxu0 0.0
        %1120 = vmatpush1.msra.mxu0 0.0
        %1121 = vmatprep.subr.mxu0 0.0
        %1122 = vmatpush1.msra.mxu0 0.0
        %1123 = vmatprep.subr.mxu0 0.0
        %1124 = vmatpush1.msra.mxu0 0.0
        %1125 = vmatprep.subr.mxu0 0.0
        %1126 = vmatpush1.msra.mxu0 0.0
        %1127 = vmatprep.subr.mxu0 0.0
        %1128 = vmatpush1.msra.mxu0 0.0
        %1129 = vmatprep.subr.mxu0 0.0
        %1130 = vmatpush1.msra.mxu0 0.0
        %1131 = vmatprep.subr.mxu0 0.0
        %1132 = vmatpush1.msra.mxu0 0.0
        %1133 = vmatprep.subr.mxu0 0.0
        %1134 = vmatpush1.msra.mxu0 0.0
        %1135 = vmatprep.subr.mxu0 0.0
        %1136 = vmatpush1.msra.mxu0 0.0
        %1137 = vmatprep.subr.mxu0 0.0
        %1138 = vmatpush1.msra.mxu0 0.0
        %1139 = vmatprep.subr.mxu0 0.0
        %1140 = vmatpush1.msra.mxu0 0.0
        %1141 = vmatprep.subr.mxu0 0.0
        %1142 = vmatpush1.msra.mxu0 0.0
        %1143 = vmatprep.subr.mxu0 0.0
        %1144 = vmatpush1.msra.mxu0 0.0
        %1145 = vmatprep.subr.mxu0 0.0
        %1146 = vmatpush1.msra.mxu0 0.0
        %1147 = vmatprep.subr.mxu0 0.0
        %1148 = vmatpush1.msra.mxu0 0.0
        %1149 = vmatprep.subr.mxu0 0.0
        %1150 = vmatpush1.msra.mxu0 0.0
        %1151 = vmatprep.subr.mxu0 0.0
        %1152 = vmatpush1.msra.mxu0 0.0
        %1153 = vmatprep.subr.mxu0 0.0
        %1154 = vmatpush1.msra.mxu0 0.0
        %1155 = vmatprep.subr.mxu0 0.0
        %1156 = vmatpush1.msra.mxu0 0.0
        %1157 = vmatprep.subr.mxu0 0.0
        %1158 = vmatpush1.msra.mxu0 0.0
        %1159 = vmatprep.subr.mxu0 0.0
        %1160 = vmatpush1.msra.mxu0 0.0
        %1161 = vmatprep.subr.mxu0 0.0
        %1162 = vmatpush1.msra.mxu0 0.0
        %1163 = vmatprep.subr.mxu0 0.0
        %1164 = vmatpush1.msra.mxu0 0.0
        %1165 = vmatprep.subr.mxu0 0.0
        %1166 = vmatpush1.msra.mxu0 0.0
        %1167 = vmatprep.mubr.f32.mxu0 0.0
        %1168 = vmatmul.mubr.f32.gmra.mrb[0].mxu0 %v1101
        %v1169 = vpop.f32.mrb[0].mxu0
        %v1170 = vadd.f32 0.0, %v1169
        %v1171 = vpop.f32.mrb[0].mxu0
        %1172 = vdwg.mxu0
        %v1173 = vadd.f32 %v1099, %v1170
        %1174 = vxpose.xlu0.b32.start [1/16] %v1089, 128
        %1175 = vxpose.xlu0.b32.cont [2/16] 0.0, 128
        %1176 = vxpose.xlu0.b32.cont [3/16] 0.0, 128
        %1177 = vxpose.xlu0.b32.cont [4/16] 0.0, 128
        %1178 = vxpose.xlu0.b32.cont [5/16] 0.0, 128
        %1179 = vxpose.xlu0.b32.cont [6/16] 0.0, 128
        %1180 = vxpose.xlu0.b32.cont [7/16] 0.0, 128
        %1181 = vxpose.xlu0.b32.cont [8/16] 0.0, 128
        %1182 = vxpose.xlu0.b32.cont [9/16] 0.0, 128
        %1183 = vxpose.xlu0.b32.cont [10/16] 0.0, 128
        %1184 = vxpose.xlu0.b32.cont [11/16] 0.0, 128
        %1185 = vxpose.xlu0.b32.cont [12/16] 0.0, 128
        %1186 = vxpose.xlu0.b32.cont [13/16] 0.0, 128
        %1187 = vxpose.xlu0.b32.cont [14/16] 0.0, 128
        %1188 = vxpose.xlu0.b32.cont [15/16] 0.0, 128
        %1189 = vxpose.xlu0.b32.end [16/16] 0.0, 128
        %v1190 = vpop.trf.xlu0
        %v1191 = vpop.trf.xlu0
        %v1192 = vpop.trf.xlu0
        %v1193 = vpop.trf.xlu0
        %v1194 = vpop.trf.xlu0
        %v1195 = vpop.trf.xlu0
        %v1196 = vpop.trf.xlu0
        %v1197 = vpop.trf.xlu0
        %v1198 = vpop.trf.xlu0
        %v1199 = vpop.trf.xlu0
        %v1200 = vpop.trf.xlu0
        %v1201 = vpop.trf.xlu0
        %v1202 = vpop.trf.xlu0
        %v1203 = vpop.trf.xlu0
        %v1204 = vpop.trf.xlu0
        %v1205 = vpop.trf.xlu0
        %v1207 = vsel %vm236, %v1190, 0
        %1209 = vmatprep.subr.mxu0 0.0
        %1210 = vmatpush1.msra.mxu0 %v237
        %1211 = vmatprep.subr.mxu0 0.0
        %1212 = vmatpush1.msra.mxu0 0.0
        %1213 = vmatprep.subr.mxu0 0.0
        %1214 = vmatpush1.msra.mxu0 0.0
        %1215 = vmatprep.subr.mxu0 0.0
        %1216 = vmatpush1.msra.mxu0 0.0
        %1217 = vmatprep.subr.mxu0 0.0
        %1218 = vmatpush1.msra.mxu0 0.0
        %1219 = vmatprep.subr.mxu0 0.0
        %1220 = vmatpush1.msra.mxu0 0.0
        %1221 = vmatprep.subr.mxu0 0.0
        %1222 = vmatpush1.msra.mxu0 0.0
        %1223 = vmatprep.subr.mxu0 0.0
        %1224 = vmatpush1.msra.mxu0 0.0
        %1225 = vmatprep.subr.mxu0 0.0
        %1226 = vmatpush1.msra.mxu0 0.0
        %1227 = vmatprep.subr.mxu0 0.0
        %1228 = vmatpush1.msra.mxu0 0.0
        %1229 = vmatprep.subr.mxu0 0.0
        %1230 = vmatpush1.msra.mxu0 0.0
        %1231 = vmatprep.subr.mxu0 0.0
        %1232 = vmatpush1.msra.mxu0 0.0
        %1233 = vmatprep.subr.mxu0 0.0
        %1234 = vmatpush1.msra.mxu0 0.0
        %1235 = vmatprep.subr.mxu0 0.0
        %1236 = vmatpush1.msra.mxu0 0.0
        %1237 = vmatprep.subr.mxu0 0.0
        %1238 = vmatpush1.msra.mxu0 0.0
        %1239 = vmatprep.subr.mxu0 0.0
        %1240 = vmatpush1.msra.mxu0 0.0
        %1241 = vmatprep.subr.mxu0 0.0
        %1242 = vmatpush1.msra.mxu0 0.0
        %1243 = vmatprep.subr.mxu0 0.0
        %1244 = vmatpush1.msra.mxu0 0.0
        %1245 = vmatprep.subr.mxu0 0.0
        %1246 = vmatpush1.msra.mxu0 0.0
        %1247 = vmatprep.subr.mxu0 0.0
        %1248 = vmatpush1.msra.mxu0 0.0
        %1249 = vmatprep.subr.mxu0 0.0
        %1250 = vmatpush1.msra.mxu0 0.0
        %1251 = vmatprep.subr.mxu0 0.0
        %1252 = vmatpush1.msra.mxu0 0.0
        %1253 = vmatprep.subr.mxu0 0.0
        %1254 = vmatpush1.msra.mxu0 0.0
        %1255 = vmatprep.subr.mxu0 0.0
        %1256 = vmatpush1.msra.mxu0 0.0
        %1257 = vmatprep.subr.mxu0 0.0
        %1258 = vmatpush1.msra.mxu0 0.0
        %1259 = vmatprep.subr.mxu0 0.0
        %1260 = vmatpush1.msra.mxu0 0.0
        %1261 = vmatprep.subr.mxu0 0.0
        %1262 = vmatpush1.msra.mxu0 0.0
        %1263 = vmatprep.subr.mxu0 0.0
        %1264 = vmatpush1.msra.mxu0 0.0
        %1265 = vmatprep.subr.mxu0 0.0
        %1266 = vmatpush1.msra.mxu0 0.0
        %1267 = vmatprep.subr.mxu0 0.0
        %1268 = vmatpush1.msra.mxu0 0.0
        %1269 = vmatprep.subr.mxu0 0.0
        %1270 = vmatpush1.msra.mxu0 0.0
        %1271 = vmatprep.subr.mxu0 0.0
        %1272 = vmatpush1.msra.mxu0 0.0
        %1273 = vmatprep.mubr.f32.mxu0 0.0
        %1274 = vmatmul.mubr.f32.gmra.mrb[0].mxu0 %v1207
        %v1275 = vpop.f32.mrb[0].mxu0
        %v1276 = vadd.f32 0.0, %v1275
        %v1277 = vpop.f32.mrb[0].mxu0
        %1278 = vdwg.mxu0
        %1280 = vrot.lane.b32.xlu0 %v1173, 16
        %v1281 = vpop.permute.xlu0 %1280
        %1284 = vrot.lane.b32.xlu0 %v1276, 32
        %v1285 = vpop.permute.xlu0 %1284
        %v1287 = vsel %vm264, %v237, %v1281
        %vm1288 = vcmask 261120
        %v1289 = vsel %vm1288, %v1287, %v1285
        %v1290 = vld [vmem:[%s2] sm:$0xff]
        %v1291 = vld [vmem:[%s2 + $0x8] sm:$0xff]
        %v1292 = vld [vmem:[%s2 + $0x10] sm:$0xff]
        %v1293 = vld [vmem:[%s2 + $0x18] sm:$0xff]
        %v1294 = vld [vmem:[%s2 + $0x20] sm:$0xff]
        %v1295 = vld [vmem:[%s2 + $0x28] sm:$0xff]
        %v1296 = vlaneseq
        %v1297 = vshrl.u32 %v1296, 7
        %v1298 = vsub.s32 0, %v1297
        %v1299 = vrot.slane %v250, %v1298
        %vm1300 = vcmask 392192
        %v1302 = vsel %vm1300, %v1289, 0
        %1304 = vmatprep.subr.mxu0 0.0
        %1305 = vmatpush1.msra.mxu0 %v1290
        %1306 = vmatprep.subr.mxu0 0.0
        %1307 = vmatpush1.msra.mxu0 %v1291
        %1308 = vmatprep.subr.mxu0 0.0
        %1309 = vmatpush1.msra.mxu0 %v1292
        %1310 = vmatprep.subr.mxu0 0.0
        %1311 = vmatpush1.msra.mxu0 %v1293
        %1312 = vmatprep.subr.mxu0 0.0
        %1313 = vmatpush1.msra.mxu0 %v1294
        %1314 = vmatprep.subr.mxu0 0.0
        %1315 = vmatpush1.msra.mxu0 %v1295
        %1316 = vmatprep.subr.mxu0 0.0
        %1317 = vmatpush1.msra.mxu0 0.0
        %1318 = vmatprep.subr.mxu0 0.0
        %1319 = vmatpush1.msra.mxu0 0.0
        %1320 = vmatprep.subr.mxu0 0.0
        %1321 = vmatpush1.msra.mxu0 0.0
        %1322 = vmatprep.subr.mxu0 0.0
        %1323 = vmatpush1.msra.mxu0 0.0
        %1324 = vmatprep.subr.mxu0 0.0
        %1325 = vmatpush1.msra.mxu0 0.0
        %1326 = vmatprep.subr.mxu0 0.0
        %1327 = vmatpush1.msra.mxu0 0.0
        %1328 = vmatprep.subr.mxu0 0.0
        %1329 = vmatpush1.msra.mxu0 0.0
        %1330 = vmatprep.subr.mxu0 0.0
        %1331 = vmatpush1.msra.mxu0 0.0
        %1332 = vmatprep.subr.mxu0 0.0
        %1333 = vmatpush1.msra.mxu0 0.0
        %1334 = vmatprep.subr.mxu0 0.0
        %1335 = vmatpush1.msra.mxu0 0.0
        %1336 = vmatprep.subr.mxu0 0.0
        %1337 = vmatpush1.msra.mxu0 0.0
        %1338 = vmatprep.subr.mxu0 0.0
        %1339 = vmatpush1.msra.mxu0 0.0
        %1340 = vmatprep.subr.mxu0 0.0
        %1341 = vmatpush1.msra.mxu0 0.0
        %1342 = vmatprep.subr.mxu0 0.0
        %1343 = vmatpush1.msra.mxu0 0.0
        %1344 = vmatprep.subr.mxu0 0.0
        %1345 = vmatpush1.msra.mxu0 0.0
        %1346 = vmatprep.subr.mxu0 0.0
        %1347 = vmatpush1.msra.mxu0 0.0
        %1348 = vmatprep.subr.mxu0 0.0
        %1349 = vmatpush1.msra.mxu0 0.0
        %1350 = vmatprep.subr.mxu0 0.0
        %1351 = vmatpush1.msra.mxu0 0.0
        %1352 = vmatprep.subr.mxu0 0.0
        %1353 = vmatpush1.msra.mxu0 0.0
        %1354 = vmatprep.subr.mxu0 0.0
        %1355 = vmatpush1.msra.mxu0 0.0
        %1356 = vmatprep.subr.mxu0 0.0
        %1357 = vmatpush1.msra.mxu0 0.0
        %1358 = vmatprep.subr.mxu0 0.0
        %1359 = vmatpush1.msra.mxu0 0.0
        %1360 = vmatprep.subr.mxu0 0.0
        %1361 = vmatpush1.msra.mxu0 0.0
        %1362 = vmatprep.subr.mxu0 0.0
        %1363 = vmatpush1.msra.mxu0 0.0
        %1364 = vmatprep.subr.mxu0 0.0
        %1365 = vmatpush1.msra.mxu0 0.0
        %1366 = vmatprep.subr.mxu0 0.0
        %1367 = vmatpush1.msra.mxu0 0.0
        %1368 = vmatprep.mubr.f32.mxu0 0.0
        %1369 = vmatmul.mubr.f32.gmra.mrb[0].mxu0 %v1302
        %v1370 = vpop.f32.mrb[0].mxu0
        %v1371 = vadd.f32 %v1299, %v1370
        %v1372 = vpop.f32.mrb[0].mxu0
        %1373 = vdwg.mxu0
        %v1374 = vmax.f32 %v1371, 0.0
        %1375 = vst [vmem:[%s219] sm:$0xff] %v1374
        %1376 = vrot.lane.b32.xlu0 %v1089, 1
        %v1377 = vpop.permute.xlu0 %1376
        %vm1379 = vcmask 7168
        %v1380 = vsel %vm1379, %v1083, %v1377
        %vm1381 = vcmask 72704
        %v1382 = vsel %vm1381, %v1380, 0.0
        %1383 = vst [vmem:[%s226] sm:$0xff] %v1382
        %s1384 = sand.u32 %s120, 1
        %s1385 = scalar_lea.sflag [#allocation5], %s1384
        %s1386 = sand.u32 %s120, 1
        %s1387 = smul.addr %s1386, 8
        %s1388 = scalar_lea.vmem [#allocation4], %s1387
        %s1389 = sand.u32 %s146, 1
        %s1390 = scalar_lea.sflag [#allocation7], %s1389
        %s1391 = sand.u32 %s146, 1
        %s1392 = smul.addr %s1391, 8
        %s1393 = scalar_lea.vmem [#allocation6], %s1392
        // Predicated region
        $region37: #{tpu_custom_call.1} parent=35 // pred_check
          %p1394 = pneg %p130
        $region38: #{tpu_custom_call.1} parent=35 // pred_check_branch
          %1396 = sbr.rel (%p1394) target = $region40
        $region39: #{tpu_custom_call.1} parent=35 // pred_region
          %s1398 = ssub.s32 128, 128
          %1399 = vsyncadd %s1385, %s1398
          %s1400 = smul.addr %s23, 128
          %s1401 = scalar_lea.hbm %s4, %s1400
          %s1403 = sshll.u32 %s1388, 4
          %s1404 = int_to_ptr.vmem [resolvable:$true] %s1403
          %1406 = dma.vmem_to_hbm [thread:$0]  %s1404, 128, %s1401, %s1385
        $region40: #{tpu_custom_call.1} parent=35 // pred_fallthru
          _
        // Predicated region
        $region41: #{tpu_custom_call.1} parent=35 // pred_check
          %p1407 = pneg %p156
        $region42: #{tpu_custom_call.1} parent=35 // pred_check_branch
          %1409 = sbr.rel (%p1407) target = $region44
        $region43: #{tpu_custom_call.1} parent=35 // pred_region
          %s1411 = ssub.s32 128, 128
          %1412 = vsyncadd %s1390, %s1411
          %s1413 = smul.addr %s23, 128
          %s1414 = scalar_lea.hbm %s5, %s1413
          %s1416 = sshll.u32 %s1393, 4
          %s1417 = int_to_ptr.vmem [resolvable:$true] %s1416
          %1419 = dma.vmem_to_hbm [thread:$0]  %s1417, 128, %s1414, %s1390
        $region44: #{tpu_custom_call.1} parent=35 // pred_fallthru
          _
      $region36: #{tpu_custom_call.1} parent=5 // pred_fallthru
        _
      %p1420 = scmp.le.s32.totalorder 2, %s18
      // Predicated region
      $region45: #{tpu_custom_call.1} parent=5 // pred_check
        %p1421 = pneg %p1420
      $region46: #{tpu_custom_call.1} parent=5 // pred_check_branch
        %1423 = sbr.rel (%p1421) target = $region48
      $region47: #{tpu_custom_call.1} parent=5 // pred_region
        %s1424 = ssub.s32 %s18, 2
        // Predicated region
        $region49: #{tpu_custom_call.1} parent=47 // pred_check
          %p1425 = pneg %p136
        $region50: #{tpu_custom_call.1} parent=47 // pred_check_branch
          %1427 = sbr.rel (%p1425) target = $region52
        $region51: #{tpu_custom_call.1} parent=47 // pred_region
          %s1428 = sand.u32 %s121, 1
          %s1429 = scalar_lea.sflag [#allocation5], %s1428
          %s1430 = sand.u32 %s121, 1
          %s1431 = smul.addr %s1430, 8
          %s1432 = scalar_lea.vmem [#allocation4], %s1431
          %1433 = dma.done %s1429, 128
        $region52: #{tpu_custom_call.1} parent=47 // pred_fallthru
          _
        // Predicated region
        $region53: #{tpu_custom_call.1} parent=47 // pred_check
          %p1434 = pneg %p162
        $region54: #{tpu_custom_call.1} parent=47 // pred_check_branch
          %1436 = sbr.rel (%p1434) target = $region56
        $region55: #{tpu_custom_call.1} parent=47 // pred_region
          %s1437 = sand.u32 %s147, 1
          %s1438 = scalar_lea.sflag [#allocation7], %s1437
          %s1439 = sand.u32 %s147, 1
          %s1440 = smul.addr %s1439, 8
          %s1441 = scalar_lea.vmem [#allocation6], %s1440
          %1442 = dma.done %s1438, 128
        $region56: #{tpu_custom_call.1} parent=47 // pred_fallthru
          _
      $region48: #{tpu_custom_call.1} parent=5 // pred_fallthru
        _
    $region6: #{tpu_custom_call.1} parent=1 // loop_footer
      %s22 = sadd.s32 1, %s18
    $region7: #{tpu_custom_call.1} parent=1 // loop_footer_branch
      %17 = sbr.rel target = $region3
    $region8: #{tpu_custom_call.1} parent=1 // loop_exit
      _
    %1443 = vsyncpa [#allocation5], 1
    %s1444 = scalar_lea.sflag [#allocation5], 1
    %1445 = vsyncpa %s1444, 1
    %1446 = vsyncpa [#allocation7], 1
    %s1447 = scalar_lea.sflag [#allocation7], 1
    %1448 = vsyncpa %s1447, 1

</llo_original>
